<compile_context>
chip_gen: v6e
topology: v6e:2x2x1
jax: 0.10.0
libtpu: 0.0.40
codegen_flags: <defaults>
</compile_context>

<pallas_src>
import functools

import jax
import jax.numpy as jnp
from jax import lax
from jax.experimental import pallas as pl
from jax.experimental.pallas import tpu as pltpu

CIN, COUT = 19, 12
KH, KW = 3, 6
SH, SW = 3, 1        # stride
PH, PW = 2, 1        # padding
OPH, OPW = 1, 2      # output_padding

PAD_L = KW - 1 - PW          # 4  (left W pad of the equivalent correlation)
PAD_R = KW - 1 - PW + OPW    # 6  (right W pad)


def _conv_t_sigmoid_kernel(x_ref, w_ref, b_ref, o_ref, *, macc):
    # x_ref: (CIN, Mp)          bf16  W-padded, row-flattened input (channels on sublanes)
    # w_ref: (KW, 3*COUT, CIN)  bf16  per-kw weights for all 3 output-row phases
    # b_ref: (3*COUT, 1)        f32   bias replicated per phase
    # o_ref: (3*COUT, macc)     f32   lane-dense phase slab (macc = H*Wp)
    x = x_ref[...]
    acc = jnp.zeros((3 * COUT, macc), jnp.float32)
    for kw in range(KW):                                   # static unroll: 6 MXU matmuls
        acc = acc + jnp.dot(w_ref[kw], x[:, kw:kw + macc],  # (36,19)@(19,macc)
                            preferred_element_type=jnp.float32)
    o_ref[...] = jax.nn.sigmoid(acc + b_ref[...]).astype(o_ref.dtype)


def conv_transpose_sigmoid(x_nchw, w_t, bias):
    """x_nchw: (N, 19, H, W); w_t: ConvTranspose2d weight (19, 12, 3, 6); bias: (12,)."""
    N, Cin, H, W = x_nchw.shape
    assert Cin == CIN and H >= 2

    Wp = W + PAD_L + PAD_R          # padded row width
    OW = Wp - (KW - 1)              # = W + 5
    OH = SH * (H - 1)               # = 3H - 3
    Mfull = H * Wp                  # flat spatial extent (kernel output width)
    Mp = Mfull + 8                  # slack so x[:, kw:kw+Mfull] stays in bounds (kw <= 5)

    # ---- glue (plain JAX): W-only pad, flatten rows, bf16 cast ----
    x_pad = jnp.pad(x_nchw.astype(jnp.float32),
                    ((0, 0), (0, 0), (0, 0), (PAD_L, PAD_R)))       # (N, Cin, H, Wp)
    x_flat = x_pad.reshape(N, CIN, Mfull)
    x_flat = jnp.pad(x_flat, ((0, 0), (0, 0), (0, Mp - Mfull))).astype(jnp.bfloat16)

    # Phase-packed, pre-flipped weights:
    #   w_all[kw, p*COUT+co, ci] = w_t[ci, co, KH-1-kh_p, KW-1-kw],  kh_p = (3-p)%3
    kh_sel = jnp.array([KH - 1 - 0, KH - 1 - 2, KH - 1 - 1])        # [2, 0, 1]
    w_sel = w_t.astype(jnp.float32)[:, :, kh_sel, :][:, :, :, ::-1]  # (Cin, Cout, 3, KW)
    w_all = jnp.transpose(w_sel, (3, 2, 1, 0)).reshape(KW, 3 * COUT, CIN)
    w_all = w_all.astype(jnp.bfloat16)

    b36 = jnp.tile(bias.astype(jnp.float32), 3).reshape(3 * COUT, 1)

    # ---- hot path: Pallas kernel, grid over batch ----
    kernel = functools.partial(_conv_t_sigmoid_kernel, macc=Mfull)
    res = pl.pallas_call(
        kernel,
        out_shape=jax.ShapeDtypeStruct((N, 3 * COUT, Mfull), jnp.float32),
        grid=(N,),
        in_specs=[
            pl.BlockSpec((None, CIN, Mp), lambda n: (n, 0, 0)),
            pl.BlockSpec((KW, 3 * COUT, CIN), lambda n: (0, 0, 0)),
            pl.BlockSpec((3 * COUT, 1), lambda n: (0, 0)),
        ],
        out_specs=pl.BlockSpec((None, 3 * COUT, Mfull), lambda n: (n, 0, 0)),
        compiler_params=pltpu.CompilerParams(dimension_semantics=("parallel",)),
    )(x_flat, w_all, b36)

    # ---- glue: de-interleave phases / crop W pad -> NCHW ----
    res = res.reshape(N, 3, COUT, H, Wp)
    y0 = res[:, 0, :, 0:H - 1, :OW]   # oh = 3q   <- input row q
    y1 = res[:, 1, :, 1:H,     :OW]   # oh = 3q+1 <- input row q+1
    y2 = res[:, 2, :, 1:H,     :OW]   # oh = 3q+2 <- input row q+1
    y = jnp.stack([y0, y1, y2], axis=3)             # (N, COUT, H-1, 3, OW)
    return y.reshape(N, COUT, OH, OW)


def reference(x_nchw, w_t, bias):
    """Pure-JAX reference (XLA dilated conv) for validation."""
    x = jnp.transpose(x_nchw, (0, 2, 3, 1)).astype(jnp.float32)
    w_hwio = jnp.transpose(w_t[:, :, ::-1, ::-1], (2, 3, 0, 1)).astype(jnp.float32)
    pad = ((KH - 1 - PH, KH - 1 - PH + OPH), (KW - 1 - PW, KW - 1 - PW + OPW))
    y = lax.conv_general_dilated(
        x, w_hwio, window_strides=(1, 1), padding=pad,
        lhs_dilation=(SH, SW),
        dimension_numbers=("NHWC", "HWIO", "NHWC"))
    y = jax.nn.sigmoid(y + bias.reshape(1, 1, 1, COUT))
    return jnp.transpose(y, (0, 3, 1, 2))


if __name__ == "__main__":
    key = jax.random.PRNGKey(0)
    kx, kw, kb = jax.random.split(key, 3)

    # small shapes consistent with the module (Cin must be 19)
    N, H, W = 2, 12, 32
    x1 = jax.random.normal(kx, (N, CIN, H, W), jnp.float32)
    # deterministic synthetic parameters (shapes from ConvTranspose2d.__init__)
    w_t = jax.random.normal(kw, (CIN, COUT, KH, KW), jnp.float32) * 0.05
    b = jax.random.normal(kb, (COUT,), jnp.float32) * 0.1

    out = jax.block_until_ready(conv_transpose_sigmoid(x1, w_t, b))

    # expected output spatial size: H_out = 3H - 3, W_out = W + 5
    assert out.shape == (N, COUT, 3 * H - 3, W + 5), out.shape
    ref = reference(x1, w_t, b)
    err = float(jnp.max(jnp.abs(out - ref)))
    assert jnp.allclose(out, ref, atol=1e-2, rtol=0.0), err

    print("KERNEL_OK")
</pallas_src>

<mosaic_0001>
module attributes {stable_mosaic.version = 11 : i64} {
  func.func @_conv_t_sigmoid_kernel(%arg0: i32, %arg1: memref<1x19x512xbf16, #tpu.memory_space<vmem>>, %arg2: memref<6x36x19xbf16, #tpu.memory_space<vmem>>, %arg3: memref<36x1xf32, #tpu.memory_space<vmem>>, %arg4: memref<1x36x504xf32, #tpu.memory_space<vmem>>) attributes {dimension_semantics = [#tpu.dimension_semantics<parallel>], iteration_bounds = array<i64: 2>, scalar_prefetch = 0 : i64, scratch_operands = 0 : i64, tpu.core_type = #tpu.core_type<tc>, window_params = [{transform_indices = @transform_0, window_bounds = array<i64: 1, 19, 512>}, {pipeline_mode = #tpu.pipeline_mode<synchronous>, transform_indices = @transform_1, window_bounds = array<i64: 6, 36, 19>}, {pipeline_mode = #tpu.pipeline_mode<synchronous>, transform_indices = @transform_2, window_bounds = array<i64: 36, 1>}, {transform_indices = @transform_3, window_bounds = array<i64: 1, 36, 504>}]} {
    %c0 = arith.constant 0 : index
    %c0_0 = arith.constant 0 : index
    %c0_1 = arith.constant 0 : index
    %0 = vector.load %arg1[%c0, %c0_0, %c0_1] : memref<1x19x512xbf16, #tpu.memory_space<vmem>>, vector<1x19x512xbf16>
    %1 = vector.shape_cast %0 : vector<1x19x512xbf16> to vector<19x512xbf16>
    %cst = arith.constant 0.000000e+00 : f32
    %2 = vector.broadcast %cst : f32 to vector<36x504xf32>
    %c0_2 = arith.constant 0 : index
    %c0_3 = arith.constant 0 : index
    %c0_4 = arith.constant 0 : index
    %3 = vector.load %arg2[%c0_2, %c0_3, %c0_4] : memref<6x36x19xbf16, #tpu.memory_space<vmem>>, vector<1x36x19xbf16>
    %4 = vector.shape_cast %3 : vector<1x36x19xbf16> to vector<36x19xbf16>
    %5 = vector.extract_strided_slice %1 {offsets = [0, 0], sizes = [19, 504], strides = [1, 1]} : vector<19x512xbf16> to vector<19x504xbf16>
    %cst_5 = arith.constant dense<0.000000e+00> : vector<36x504xf32>
    %6 = tpu.matmul %4, %5, %cst_5 {dimension_numbers = #tpu.dot_dimension_numbers<[1], [0], [0], [1], [0, 0, 1, 1], [], []>} : vector<36x19xbf16>, vector<19x504xbf16>, vector<36x504xf32> -> vector<36x504xf32>
    %7 = arith.addf %2, %6 : vector<36x504xf32>
    %c1 = arith.constant 1 : index
    %c0_6 = arith.constant 0 : index
    %c0_7 = arith.constant 0 : index
    %8 = vector.load %arg2[%c1, %c0_6, %c0_7] : memref<6x36x19xbf16, #tpu.memory_space<vmem>>, vector<1x36x19xbf16>
    %9 = vector.shape_cast %8 : vector<1x36x19xbf16> to vector<36x19xbf16>
    %10 = vector.extract_strided_slice %1 {offsets = [0, 1], sizes = [19, 504], strides = [1, 1]} : vector<19x512xbf16> to vector<19x504xbf16>
    %cst_8 = arith.constant dense<0.000000e+00> : vector<36x504xf32>
    %11 = tpu.matmul %9, %10, %cst_8 {dimension_numbers = #tpu.dot_dimension_numbers<[1], [0], [0], [1], [0, 0, 1, 1], [], []>} : vector<36x19xbf16>, vector<19x504xbf16>, vector<36x504xf32> -> vector<36x504xf32>
    %12 = arith.addf %7, %11 : vector<36x504xf32>
    %c2 = arith.constant 2 : index
    %c0_9 = arith.constant 0 : index
    %c0_10 = arith.constant 0 : index
    %13 = vector.load %arg2[%c2, %c0_9, %c0_10] : memref<6x36x19xbf16, #tpu.memory_space<vmem>>, vector<1x36x19xbf16>
    %14 = vector.shape_cast %13 : vector<1x36x19xbf16> to vector<36x19xbf16>
    %15 = vector.extract_strided_slice %1 {offsets = [0, 2], sizes = [19, 504], strides = [1, 1]} : vector<19x512xbf16> to vector<19x504xbf16>
    %cst_11 = arith.constant dense<0.000000e+00> : vector<36x504xf32>
    %16 = tpu.matmul %14, %15, %cst_11 {dimension_numbers = #tpu.dot_dimension_numbers<[1], [0], [0], [1], [0, 0, 1, 1], [], []>} : vector<36x19xbf16>, vector<19x504xbf16>, vector<36x504xf32> -> vector<36x504xf32>
    %17 = arith.addf %12, %16 : vector<36x504xf32>
    %c3 = arith.constant 3 : index
    %c0_12 = arith.constant 0 : index
    %c0_13 = arith.constant 0 : index
    %18 = vector.load %arg2[%c3, %c0_12, %c0_13] : memref<6x36x19xbf16, #tpu.memory_space<vmem>>, vector<1x36x19xbf16>
    %19 = vector.shape_cast %18 : vector<1x36x19xbf16> to vector<36x19xbf16>
    %20 = vector.extract_strided_slice %1 {offsets = [0, 3], sizes = [19, 504], strides = [1, 1]} : vector<19x512xbf16> to vector<19x504xbf16>
    %cst_14 = arith.constant dense<0.000000e+00> : vector<36x504xf32>
    %21 = tpu.matmul %19, %20, %cst_14 {dimension_numbers = #tpu.dot_dimension_numbers<[1], [0], [0], [1], [0, 0, 1, 1], [], []>} : vector<36x19xbf16>, vector<19x504xbf16>, vector<36x504xf32> -> vector<36x504xf32>
    %22 = arith.addf %17, %21 : vector<36x504xf32>
    %c4 = arith.constant 4 : index
    %c0_15 = arith.constant 0 : index
    %c0_16 = arith.constant 0 : index
    %23 = vector.load %arg2[%c4, %c0_15, %c0_16] : memref<6x36x19xbf16, #tpu.memory_space<vmem>>, vector<1x36x19xbf16>
    %24 = vector.shape_cast %23 : vector<1x36x19xbf16> to vector<36x19xbf16>
    %25 = vector.extract_strided_slice %1 {offsets = [0, 4], sizes = [19, 504], strides = [1, 1]} : vector<19x512xbf16> to vector<19x504xbf16>
    %cst_17 = arith.constant dense<0.000000e+00> : vector<36x504xf32>
    %26 = tpu.matmul %24, %25, %cst_17 {dimension_numbers = #tpu.dot_dimension_numbers<[1], [0], [0], [1], [0, 0, 1, 1], [], []>} : vector<36x19xbf16>, vector<19x504xbf16>, vector<36x504xf32> -> vector<36x504xf32>
    %27 = arith.addf %22, %26 : vector<36x504xf32>
    %c5 = arith.constant 5 : index
    %c0_18 = arith.constant 0 : index
    %c0_19 = arith.constant 0 : index
    %28 = vector.load %arg2[%c5, %c0_18, %c0_19] : memref<6x36x19xbf16, #tpu.memory_space<vmem>>, vector<1x36x19xbf16>
    %29 = vector.shape_cast %28 : vector<1x36x19xbf16> to vector<36x19xbf16>
    %30 = vector.extract_strided_slice %1 {offsets = [0, 5], sizes = [19, 504], strides = [1, 1]} : vector<19x512xbf16> to vector<19x504xbf16>
    %cst_20 = arith.constant dense<0.000000e+00> : vector<36x504xf32>
    %31 = tpu.matmul %29, %30, %cst_20 {dimension_numbers = #tpu.dot_dimension_numbers<[1], [0], [0], [1], [0, 0, 1, 1], [], []>} : vector<36x19xbf16>, vector<19x504xbf16>, vector<36x504xf32> -> vector<36x504xf32>
    %32 = arith.addf %27, %31 : vector<36x504xf32>
    %c0_21 = arith.constant 0 : index
    %c0_22 = arith.constant 0 : index
    %33 = vector.load %arg3[%c0_21, %c0_22] : memref<36x1xf32, #tpu.memory_space<vmem>>, vector<36x1xf32>
    %34 = vector.broadcast %33 : vector<36x1xf32> to vector<36x504xf32>
    %35 = arith.addf %32, %34 : vector<36x504xf32>
    %36 = arith.negf %35 : vector<36x504xf32>
    %37 = math.exp %36 : vector<36x504xf32>
    %cst_23 = arith.constant 1.000000e+00 : f32
    %38 = vector.broadcast %cst_23 : f32 to vector<36x504xf32>
    %39 = arith.addf %38, %37 : vector<36x504xf32>
    %40 = arith.divf %38, %39 : vector<36x504xf32>
    %c0_24 = arith.constant 0 : index
    %c0_25 = arith.constant 0 : index
    %c0_26 = arith.constant 0 : index
    %41 = vector.load %arg4[%c0_24, %c0_25, %c0_26] : memref<1x36x504xf32, #tpu.memory_space<vmem>>, vector<1x36x504xf32>
    %42 = vector.shape_cast %41 : vector<1x36x504xf32> to vector<36x504xf32>
    %43 = vector.shape_cast %40 : vector<36x504xf32> to vector<1x36x504xf32>
    tpu.vector_store %arg4[%c0_24, %c0_25, %c0_26], %43 {strides = array<i32>} : memref<1x36x504xf32, #tpu.memory_space<vmem>>, vector<1x36x504xf32>,
    return
  }
  func.func @transform_0(%arg0: i32) -> (i32, i32, i32) {
    %c0_i32 = arith.constant 0 : i32
    %c0_i32_0 = arith.constant 0 : i32
    %c0_i32_1 = arith.constant 0 : i32
    return %arg0, %c0_i32, %c0_i32_0 : i32, i32, i32
  }
  func.func @transform_1(%arg0: i32) -> (i32, i32, i32) {
    %c0_i32 = arith.constant 0 : i32
    %c0_i32_0 = arith.constant 0 : i32
    %c0_i32_1 = arith.constant 0 : i32
    %c0_i32_2 = arith.constant 0 : i32
    return %c0_i32, %c0_i32_0, %c0_i32_1 : i32, i32, i32
  }
  func.func @transform_2(%arg0: i32) -> (i32, i32) {
    %c0_i32 = arith.constant 0 : i32
    %c0_i32_0 = arith.constant 0 : i32
    %c0_i32_1 = arith.constant 0 : i32
    return %c0_i32, %c0_i32_0 : i32, i32
  }
  func.func @transform_3(%arg0: i32) -> (i32, i32, i32) {
    %c0_i32 = arith.constant 0 : i32
    %c0_i32_0 = arith.constant 0 : i32
    %c0_i32_1 = arith.constant 0 : i32
    return %arg0, %c0_i32, %c0_i32_0 : i32, i32, i32
  }
}

</mosaic_0001>

<llo_original>
// kernel: tpu_custom_call.1
$region0: #{tpu_custom_call.1}
  #allocation0 [shape = 'u32[]', space=smem, size = 0x4, offset = 0x4, fixed_abs, tag = 'smem constant byte address 0x4 - core index']
  #allocation1 [shape = 'u32[144,128]{1,0:T(1,128)}', space=vmem, size = 0x12000, scoped, tag = 'internal scratch']
  %s0 = inlined_call_operand.vmem [shape: bf16[2,19,512], index: 0, kind: input, shape index: {}]
  %s1 = inlined_call_operand.vmem [shape: bf16[6,36,19], index: 1, kind: input, shape index: {}]
  %s2 = inlined_call_operand.vmem [shape: f32[36,1], index: 2, kind: input, shape index: {}]
  %s3 = inlined_call_operand.vmem [shape: f32[2,36,504], index: 3, kind: output, shape index: {}]
  %s4 = sld [smem:[#allocation0]]
  $region45: #{tpu_custom_call.1} parent=0
    _
  %s6 = ssub.s32 1, %s4
  %s7 = scalar_select 0, %s6, %s4
  loop: start=0, step=1, limit=4
  $region2: #{tpu_custom_call.1} parent=0 // loop_pre_header
    _
  $region3: #{tpu_custom_call.1} parent=0 // loop_header
    %s9 = sphi 0, %s13
    %p10 = scmp.ge.s32.totalorder %s9, 4
    %s19 = sphi 0, %s21
    %s22 = sphi 0, %s19
    %s23 = sphi 0, %s22
    %s39 = sphi 0, %s23
    %s43 = sphi 0, %s43
    %s45 = sphi 0, %s43
    %s46 = sphi 0, %s45
    %s60 = sphi 0, %s46
    %s64 = sphi 0, %s64
    %s66 = sphi 0, %s64
    %s67 = sphi 0, %s66
    %s81 = sphi 0, %s67
    %s87 = sphi 0, %s89
    %s90 = sphi 0, %s87
    %s91 = sphi 0, %s90
    %s107 = sphi 0, %s91
  $region4: #{tpu_custom_call.1} parent=0 // loop_header_branch
    %12 = sbr.rel (%p10) target = $region8
  $region5: #{tpu_custom_call.1} parent=0 // loop_body
    %s14 = ssub.s32 %s9, 1
    %s15 = ssub.s32 %s9, 2
    %s16 = sadd.s32 %s9, 1
    %s17 = ssub.s32 %s9, %s16
    %p18 = scmp.eq.s32.totalorder %s17, 0
    %s20 = sadd.s32 %s19, 1
    %s21 = scalar_select %p18, %s19, %s20
    %p24 = pneg %p18
    %p25 = scmp.eq.s32.totalorder %s9, 1
    %p26 = por %p24, %p25
    %p27 = scmp.ne.s32.totalorder %s19, %s22
    %p28 = scmp.eq.s32.totalorder %s9, 0
    %p29 = por %p27, %p28
    %p30 = scmp.ne.s32.totalorder %s19, %s22
    %p31 = scmp.eq.s32.totalorder %s14, 1
    %p32 = por %p30, %p31
    %p33 = scmp.ne.s32.totalorder %s22, %s23
    %p34 = scmp.eq.s32.totalorder %s14, 0
    %p35 = por %p33, %p34
    %p36 = scmp.ne.s32.totalorder %s22, %s23
    %p37 = scmp.eq.s32.totalorder %s15, 1
    %p38 = por %p36, %p37
    %p40 = scmp.ne.s32.totalorder %s23, %s39
    %p41 = scmp.eq.s32.totalorder %s15, 0
    %p42 = por %p40, %p41
    %s44 = sadd.s32 %s43, 1
    %p47 = scmp.eq.s32.totalorder %s9, 1
    %p48 = scmp.ne.s32.totalorder %s43, %s45
    %p49 = scmp.eq.s32.totalorder %s9, 0
    %p50 = por %p48, %p49
    %p51 = scmp.ne.s32.totalorder %s43, %s45
    %p52 = scmp.eq.s32.totalorder %s14, 1
    %p53 = por %p51, %p52
    %p54 = scmp.ne.s32.totalorder %s45, %s46
    %p55 = scmp.eq.s32.totalorder %s14, 0
    %p56 = por %p54, %p55
    %p57 = scmp.ne.s32.totalorder %s45, %s46
    %p58 = scmp.eq.s32.totalorder %s15, 1
    %p59 = por %p57, %p58
    %p61 = scmp.ne.s32.totalorder %s46, %s60
    %p62 = scmp.eq.s32.totalorder %s15, 0
    %p63 = por %p61, %p62
    %s65 = sadd.s32 %s64, 1
    %p68 = scmp.eq.s32.totalorder %s9, 1
    %p69 = scmp.ne.s32.totalorder %s64, %s66
    %p70 = scmp.eq.s32.totalorder %s9, 0
    %p71 = por %p69, %p70
    %p72 = scmp.ne.s32.totalorder %s64, %s66
    %p73 = scmp.eq.s32.totalorder %s14, 1
    %p74 = por %p72, %p73
    %p75 = scmp.ne.s32.totalorder %s66, %s67
    %p76 = scmp.eq.s32.totalorder %s14, 0
    %p77 = por %p75, %p76
    %p78 = scmp.ne.s32.totalorder %s66, %s67
    %p79 = scmp.eq.s32.totalorder %s15, 1
    %p80 = por %p78, %p79
    %p82 = scmp.ne.s32.totalorder %s67, %s81
    %p83 = scmp.eq.s32.totalorder %s15, 0
    %p84 = por %p82, %p83
    %s85 = ssub.s32 %s9, %s16
    %p86 = scmp.eq.s32.totalorder %s85, 0
    %s88 = sadd.s32 %s87, 1
    %s89 = scalar_select %p86, %s87, %s88
    %p92 = pneg %p86
    %p93 = scmp.eq.s32.totalorder %s9, 1
    %p94 = por %p92, %p93
    %p95 = scmp.ne.s32.totalorder %s87, %s90
    %p96 = scmp.eq.s32.totalorder %s9, 0
    %p97 = por %p95, %p96
    %p98 = scmp.ne.s32.totalorder %s87, %s90
    %p99 = scmp.eq.s32.totalorder %s14, 1
    %p100 = por %p98, %p99
    %p101 = scmp.ne.s32.totalorder %s90, %s91
    %p102 = scmp.eq.s32.totalorder %s14, 0
    %p103 = por %p101, %p102
    %p104 = scmp.ne.s32.totalorder %s90, %s91
    %p105 = scmp.eq.s32.totalorder %s15, 1
    %p106 = por %p104, %p105
    %p108 = scmp.ne.s32.totalorder %s91, %s107
    %p109 = scmp.eq.s32.totalorder %s15, 0
    %p110 = por %p108, %p109
    %p111 = scmp.le.s32.totalorder 1, %s9
    %p112 = scmp.lt.s32.totalorder %s9, 3
    %p113 = pnand %p111, %p112
    %p114 = pneg %p113
    // Predicated region
    $region9: #{tpu_custom_call.1} parent=5 // pred_check
      _
    $region10: #{tpu_custom_call.1} parent=5 // pred_check_branch
      %116 = sbr.rel (%p113) target = $region12
    $region11: #{tpu_custom_call.1} parent=5 // pred_region
      %s117 = ssub.s32 %s9, 1
      // Predicated region
      $region13: #{tpu_custom_call.1} parent=11 // pred_check
        %p118 = pneg %p56
      $region14: #{tpu_custom_call.1} parent=11 // pred_check_branch
        %120 = sbr.rel (%p118) target = $region16
      $region15: #{tpu_custom_call.1} parent=11 // pred_region
        _
      $region16: #{tpu_custom_call.1} parent=11 // pred_fallthru
        _
      // Predicated region
      $region17: #{tpu_custom_call.1} parent=11 // pred_check
        %p121 = pneg %p77
      $region18: #{tpu_custom_call.1} parent=11 // pred_check_branch
        %123 = sbr.rel (%p121) target = $region20
      $region19: #{tpu_custom_call.1} parent=11 // pred_region
        _
      $region20: #{tpu_custom_call.1} parent=11 // pred_fallthru
        _
    $region12: #{tpu_custom_call.1} parent=5 // pred_fallthru
      _
    %p124 = scmp.lt.s32.totalorder %s9, 2
    // Predicated region
    $region21: #{tpu_custom_call.1} parent=5 // pred_check
      %p125 = pneg %p124
    $region22: #{tpu_custom_call.1} parent=5 // pred_check_branch
      %127 = sbr.rel (%p125) target = $region24
    $region23: #{tpu_custom_call.1} parent=5 // pred_region
      // Predicated region
      $region25: #{tpu_custom_call.1} parent=23 // pred_check
        %p128 = pneg %p29
      $region26: #{tpu_custom_call.1} parent=23 // pred_check_branch
        %130 = sbr.rel (%p128) target = $region28
      $region27: #{tpu_custom_call.1} parent=23 // pred_region
        %p131 = scmp.lt.s32.totalorder %s9, 1
        %s132 = scalar_select %p131, %s9, 1
        %s133 = smul.addr %s132, 12
        %s134 = smul.addr %s133, 4
        %s135 = scalar_lea.vmem %s0, %s134
      $region28: #{tpu_custom_call.1} parent=23 // pred_fallthru
        _
    $region24: #{tpu_custom_call.1} parent=5 // pred_fallthru
      _
    %p136 = scmp.le.s32.totalorder 1, %s9
    %p137 = scmp.lt.s32.totalorder %s9, 3
    %p138 = pnand %p136, %p137
    %p139 = pneg %p138
    // Predicated region
    $region29: #{tpu_custom_call.1} parent=5 // pred_check
      _
    $region30: #{tpu_custom_call.1} parent=5 // pred_check_branch
      %141 = sbr.rel (%p138) target = $region32
    $region31: #{tpu_custom_call.1} parent=5 // pred_region
      %s142 = ssub.s32 %s9, 1
      %p143 = scmp.lt.s32.totalorder %s14, 1
      %s144 = scalar_select %p143, %s14, 1
      %s145 = smul.addr %s144, 12
      %s146 = smul.addr %s145, 4
      %s147 = scalar_lea.vmem %s0, %s146
      %p148 = pneg %p35
      %p149 = pneg %p32
      %p150 = pneg %p56
      %p151 = pneg %p53
      %p152 = pneg %p77
      %p153 = pneg %p74
      %p154 = pneg %p103
      %p155 = pneg %p100
      %p156 = scmp.lt.s32.totalorder %s14, 1
      %s157 = scalar_select %p156, %s14, 1
      %s158 = smul.addr %s157, 20
      %s159 = smul.addr %s158, 8
      %s160 = scalar_lea.vmem %s3, %s159
      %p161 = scmp.lt.s32.totalorder %s14, 1
      %s162 = scalar_select %p161, %s14, 1
      %s163 = smul.addr %s162, 12
      %s164 = smul.addr %s163, 4
      %s165 = scalar_lea.vmem %s0, %s164
      %p166 = scmp.lt.s32.totalorder %s14, 1
      %s167 = scalar_select %p166, %s14, 1
      %s168 = smul.addr %s167, 20
      %s169 = smul.addr %s168, 8
      %s170 = scalar_lea.vmem %s3, %s169
      %v172 = vld [vmem:[%s165] sm:$0xff]
      %v173 = vld [vmem:[%s165 + $0x8] sm:$0xff]
      %v174 = vld [vmem:[%s165 + $0x10] sm:$0xff]
      %v175 = vld [vmem:[%s165 + $0x18] sm:$0xff]
      %v176 = vld [vmem:[%s165 + $0x20] sm:$0x33]
      %v177 = vld [vmem:[%s165 + $0x28] sm:$0x33]
      %v178 = vld [vmem:[%s1] sm:$0xf]
      %v179 = vld [vmem:[%s1 + $0x4] sm:$0xf]
      %v180 = vld [vmem:[%s1 + $0x8] sm:$0xf]
      %v181 = vld [vmem:[%s1 + $0xc] sm:$0xf]
      %v182 = vld [vmem:[%s1 + $0x10] sm:$0x3]
      %s183 = scalar_lea.vmem %s1, 20
      %v184 = vld [vmem:[%s183] sm:$0xf]
      %v185 = vld [vmem:[%s183 + $0x4] sm:$0xf]
      %v186 = vld [vmem:[%s183 + $0x8] sm:$0xf]
      %v187 = vld [vmem:[%s183 + $0xc] sm:$0xf]
      %v188 = vld [vmem:[%s183 + $0x10] sm:$0x3]
      %v194 = vunpack.c.l.b16 %v184
      %v195 = vunpack.c.l.b16 %v185
      %v196 = vunpack.c.l.b16 %v186
      %v197 = vunpack.c.l.b16 %v187
      %v198 = vunpack.c.l.b16 %v188
      %v199 = vpack.c.b16 %v195, %v194
      %v200 = vpack.c.b16 %v197, %v196
      %v201 = vpack.c.b16 %v198, %v198
      %v208 = vunpack.c.l.b16 %v172
      %v209 = vunpack.c.h.b16 %v172
      %v210 = vunpack.c.l.b16 %v173
      %v211 = vunpack.c.h.b16 %v173
      %v212 = vunpack.c.l.b16 %v174
      %v213 = vunpack.c.h.b16 %v174
      %v214 = vunpack.c.l.b16 %v175
      %v215 = vunpack.c.h.b16 %v175
      %v216 = vunpack.c.l.b16 %v176
      %v217 = vunpack.c.h.b16 %v176
      %v218 = vunpack.c.l.b16 %v177
      %v219 = vunpack.c.h.b16 %v177
      %v220 = vpack.c.b16 %v212, %v208
      %v221 = vpack.c.b16 %v213, %v209
      %v222 = vpack.c.b16 %v214, %v210
      %v223 = vpack.c.b16 %v215, %v211
      %v224 = vpack.c.b16 %v216, %v216
      %v225 = vpack.c.b16 %v217, %v217
      %v226 = vpack.c.b16 %v218, %v218
      %v227 = vpack.c.b16 %v219, %v219
      %228 = vrot.lane.b32.xlu0 %v220, 127
      %v229 = vpop.permute.xlu0 %228
      %230 = vrot.lane.b32.xlu0 %v221, 127
      %v231 = vpop.permute.xlu0 %230
      %232 = vrot.lane.b32.xlu0 %v222, 127
      %v233 = vpop.permute.xlu0 %232
      %234 = vrot.lane.b32.xlu0 %v223, 127
      %v235 = vpop.permute.xlu0 %234
      %236 = vrot.lane.b32.xlu0 %v224, 127
      %v237 = vpop.permute.xlu0 %236
      %238 = vrot.lane.b32.xlu0 %v225, 127
      %v239 = vpop.permute.xlu0 %238
      %240 = vrot.lane.b32.xlu0 %v226, 127
      %v241 = vpop.permute.xlu0 %240
      %242 = vrot.lane.b32.xlu0 %v227, 127
      %v243 = vpop.permute.xlu0 %242
      %vm244 = vcmask 1039360
      %v245 = vsel %vm244, %v229, %v231
      %v246 = vsel %vm244, %v231, %v233
      %v247 = vsel %vm244, %v233, %v235
      %v248 = vsel %vm244, %v237, %v239
      %v249 = vsel %vm244, %v239, %v241
      %v250 = vsel %vm244, %v241, %v243
      %vm255 = vcmask 154624
      %v257 = vsel %vm255, %v199, 0
      %v260 = vsel %vm255, %v200, 0
      %v263 = vsel %vm255, %v201, 0
      %vm265 = vcmask 1040384
      %vm266 = vcmask 1041408
      %v267 = vsel %vm265, 4294967295, 65535
      %v268 = vsel %vm266, %v267, 0
      %v270 = vand.u32 %v248, %v268
      %v273 = vand.u32 %v249, %v268
      %v276 = vand.u32 %v250, %v268
      %v279 = vand.u32 %v243, %v268
      %281 = vmatprep.subr.bf16.mxu0 0
      %282 = vmatpush1.bf16.msra.mxu0 0
      %283 = vmatprep.subr.bf16.mxu0 0
      %284 = vmatpush1.bf16.msra.mxu0 0
      %285 = vmatprep.subr.bf16.mxu0 0
      %286 = vmatpush1.bf16.msra.mxu0 0
      %287 = vmatprep.subr.bf16.mxu0 0
      %288 = vmatpush1.bf16.msra.mxu0 0
      %289 = vmatprep.subr.bf16.mxu0 0
      %290 = vmatpush1.bf16.msra.mxu0 0
      %291 = vmatprep.subr.bf16.mxu0 0
      %292 = vmatpush1.bf16.msra.mxu0 0
      %293 = vmatprep.subr.bf16.mxu0 %v273
      %294 = vmatpush1.bf16.msra.mxu0 %v270
      %295 = vmatprep.subr.bf16.mxu0 %v246
      %296 = vmatpush1.bf16.msra.mxu0 %v245
      %297 = vmatprep.subr.bf16.mxu0 0
      %298 = vmatpush2.bf16.msra.mxu0 0
      %299 = vmatprep.subr.bf16.mxu0 0
      %300 = vmatpush2.bf16.msra.mxu0 0
      %301 = vmatprep.subr.bf16.mxu0 0
      %302 = vmatpush2.bf16.msra.mxu0 0
      %303 = vmatprep.subr.bf16.mxu0 0
      %304 = vmatpush2.bf16.msra.mxu0 0
      %305 = vmatprep.subr.bf16.mxu0 0
      %306 = vmatpush2.bf16.msra.mxu0 0
      %307 = vmatprep.subr.bf16.mxu0 0
      %308 = vmatpush2.bf16.msra.mxu0 0
      %309 = vmatprep.subr.bf16.mxu0 0
      %310 = vmatpush2.bf16.msra.mxu0 0
      %311 = vmatprep.subr.bf16.mxu0 0
      %312 = vmatpush2.bf16.msra.mxu0 0
      %313 = vmatprep.mubr.bf16.mxu0 0
      %314 = vmatmul.mubr.bf16.gmra.mxu0 %v257
      %v315 = vpop.f32.mrf.mxu0
      %v316 = vadd.f32 0.0, %v315
      %v317 = vpop.f32.mrf.mxu0
      %v318 = vadd.f32 0.0, %v317
      %v319 = vpop.f32.mrf.mxu0
      %v320 = vadd.f32 0.0, %v319
      %v321 = vpop.f32.mrf.mxu0
      %v322 = vadd.f32 0.0, %v321
      %323 = vmatprep.mubr.bf16.mxu0 0
      %324 = vmatmul.mubr.bf16.gmra.mxu0 %v260
      %v325 = vpop.f32.mrf.mxu0
      %v326 = vadd.f32 0.0, %v325
      %v327 = vpop.f32.mrf.mxu0
      %v328 = vadd.f32 0.0, %v327
      %v329 = vpop.f32.mrf.mxu0
      %v330 = vadd.f32 0.0, %v329
      %v331 = vpop.f32.mrf.mxu0
      %v332 = vadd.f32 0.0, %v331
      %333 = vmatprep.mubr.bf16.mxu0 0
      %334 = vmatmul.mubr.bf16.gmra.mxu0 %v263
      %v335 = vpop.f32.mrf.mxu0
      %v336 = vadd.f32 0.0, %v335
      %v337 = vpop.f32.mrf.mxu0
      %v338 = vadd.f32 0.0, %v337
      %v339 = vpop.f32.mrf.mxu0
      %v340 = vpop.f32.mrf.mxu0
      %341 = vdwg.mxu0
      %342 = vmatprep.subr.bf16.mxu0 0
      %343 = vmatpush1.bf16.msra.mxu0 0
      %344 = vmatprep.subr.bf16.mxu0 0
      %345 = vmatpush1.bf16.msra.mxu0 0
      %346 = vmatprep.subr.bf16.mxu0 0
      %347 = vmatpush1.bf16.msra.mxu0 0
      %348 = vmatprep.subr.bf16.mxu0 0
      %349 = vmatpush1.bf16.msra.mxu0 0
      %350 = vmatprep.subr.bf16.mxu0 0
      %351 = vmatpush1.bf16.msra.mxu0 0
      %352 = vmatprep.subr.bf16.mxu0 0
      %353 = vmatpush1.bf16.msra.mxu0 0
      %354 = vmatprep.subr.bf16.mxu0 %v279
      %355 = vmatpush1.bf16.msra.mxu0 %v276
      %356 = vmatprep.subr.bf16.mxu0 %v235
      %357 = vmatpush1.bf16.msra.mxu0 %v247
      %358 = vmatprep.subr.bf16.mxu0 0
      %359 = vmatpush2.bf16.msra.mxu0 0
      %360 = vmatprep.subr.bf16.mxu0 0
      %361 = vmatpush2.bf16.msra.mxu0 0
      %362 = vmatprep.subr.bf16.mxu0 0
      %363 = vmatpush2.bf16.msra.mxu0 0
      %364 = vmatprep.subr.bf16.mxu0 0
      %365 = vmatpush2.bf16.msra.mxu0 0
      %366 = vmatprep.subr.bf16.mxu0 0
      %367 = vmatpush2.bf16.msra.mxu0 0
      %368 = vmatprep.subr.bf16.mxu0 0
      %369 = vmatpush2.bf16.msra.mxu0 0
      %370 = vmatprep.subr.bf16.mxu0 0
      %371 = vmatpush2.bf16.msra.mxu0 0
      %372 = vmatprep.subr.bf16.mxu0 0
      %373 = vmatpush2.bf16.msra.mxu0 0
      %374 = vmatprep.mubr.bf16.mxu0 0
      %375 = vmatmul.mubr.bf16.gmra.mxu0 %v257
      %v376 = vpop.f32.mrf.mxu0
      %v377 = vadd.f32 0.0, %v376
      %v378 = vpop.f32.mrf.mxu0
      %v379 = vadd.f32 0.0, %v378
      %v380 = vpop.f32.mrf.mxu0
      %v381 = vadd.f32 0.0, %v380
      %v382 = vpop.f32.mrf.mxu0
      %v383 = vadd.f32 0.0, %v382
      %384 = vmatprep.mubr.bf16.mxu0 0
      %385 = vmatmul.mubr.bf16.gmra.mxu0 %v260
      %v386 = vpop.f32.mrf.mxu0
      %v387 = vadd.f32 0.0, %v386
      %v388 = vpop.f32.mrf.mxu0
      %v389 = vadd.f32 0.0, %v388
      %v390 = vpop.f32.mrf.mxu0
      %v391 = vadd.f32 0.0, %v390
      %v392 = vpop.f32.mrf.mxu0
      %v393 = vadd.f32 0.0, %v392
      %394 = vmatprep.mubr.bf16.mxu0 0
      %395 = vmatmul.mubr.bf16.gmra.mxu0 %v263
      %v396 = vpop.f32.mrf.mxu0
      %v397 = vadd.f32 0.0, %v396
      %v398 = vpop.f32.mrf.mxu0
      %v399 = vadd.f32 0.0, %v398
      %v400 = vpop.f32.mrf.mxu0
      %v401 = vpop.f32.mrf.mxu0
      %402 = vdwg.mxu0
      %v408 = vunpack.c.l.b16 %v178
      %v409 = vunpack.c.l.b16 %v179
      %v410 = vunpack.c.l.b16 %v180
      %v411 = vunpack.c.l.b16 %v181
      %v412 = vunpack.c.l.b16 %v182
      %v413 = vpack.c.b16 %v409, %v408
      %v414 = vpack.c.b16 %v411, %v410
      %v415 = vpack.c.b16 %v412, %v412
      %v421 = vsel %vm255, %v413, 0
      %v424 = vsel %vm255, %v414, 0
      %v427 = vsel %vm255, %v415, 0
      %v430 = vand.u32 %v224, %v268
      %v433 = vand.u32 %v225, %v268
      %v436 = vand.u32 %v226, %v268
      %v439 = vand.u32 %v227, %v268
      %441 = vmatprep.subr.bf16.mxu0 0
      %442 = vmatpush1.bf16.msra.mxu0 0
      %443 = vmatprep.subr.bf16.mxu0 0
      %444 = vmatpush1.bf16.msra.mxu0 0
      %445 = vmatprep.subr.bf16.mxu0 0
      %446 = vmatpush1.bf16.msra.mxu0 0
      %447 = vmatprep.subr.bf16.mxu0 0
      %448 = vmatpush1.bf16.msra.mxu0 0
      %449 = vmatprep.subr.bf16.mxu0 0
      %450 = vmatpush1.bf16.msra.mxu0 0
      %451 = vmatprep.subr.bf16.mxu0 0
      %452 = vmatpush1.bf16.msra.mxu0 0
      %453 = vmatprep.subr.bf16.mxu0 %v433
      %454 = vmatpush1.bf16.msra.mxu0 %v430
      %455 = vmatprep.subr.bf16.mxu0 %v221
      %456 = vmatpush1.bf16.msra.mxu0 %v220
      %457 = vmatprep.subr.bf16.mxu0 0
      %458 = vmatpush2.bf16.msra.mxu0 0
      %459 = vmatprep.subr.bf16.mxu0 0
      %460 = vmatpush2.bf16.msra.mxu0 0
      %461 = vmatprep.subr.bf16.mxu0 0
      %462 = vmatpush2.bf16.msra.mxu0 0
      %463 = vmatprep.subr.bf16.mxu0 0
      %464 = vmatpush2.bf16.msra.mxu0 0
      %465 = vmatprep.subr.bf16.mxu0 0
      %466 = vmatpush2.bf16.msra.mxu0 0
      %467 = vmatprep.subr.bf16.mxu0 0
      %468 = vmatpush2.bf16.msra.mxu0 0
      %469 = vmatprep.subr.bf16.mxu0 0
      %470 = vmatpush2.bf16.msra.mxu0 0
      %471 = vmatprep.subr.bf16.mxu0 0
      %472 = vmatpush2.bf16.msra.mxu0 0
      %473 = vmatprep.mubr.bf16.mxu0 0
      %474 = vmatmul.mubr.bf16.gmra.mxu0 %v421
      %v475 = vpop.f32.mrf.mxu0
      %v476 = vadd.f32 %v316, %v475
      %v477 = vpop.f32.mrf.mxu0
      %v478 = vadd.f32 %v318, %v477
      %v479 = vpop.f32.mrf.mxu0
      %v480 = vadd.f32 %v320, %v479
      %v481 = vpop.f32.mrf.mxu0
      %v482 = vadd.f32 %v322, %v481
      %483 = vmatprep.mubr.bf16.mxu0 0
      %484 = vmatmul.mubr.bf16.gmra.mxu0 %v424
      %v485 = vpop.f32.mrf.mxu0
      %v486 = vadd.f32 %v326, %v485
      %v487 = vpop.f32.mrf.mxu0
      %v488 = vadd.f32 %v328, %v487
      %v489 = vpop.f32.mrf.mxu0
      %v490 = vadd.f32 %v330, %v489
      %v491 = vpop.f32.mrf.mxu0
      %v492 = vadd.f32 %v332, %v491
      %493 = vmatprep.mubr.bf16.mxu0 0
      %494 = vmatmul.mubr.bf16.gmra.mxu0 %v427
      %v495 = vpop.f32.mrf.mxu0
      %v496 = vadd.f32 %v336, %v495
      %v497 = vpop.f32.mrf.mxu0
      %v498 = vadd.f32 %v338, %v497
      %v499 = vpop.f32.mrf.mxu0
      %v500 = vpop.f32.mrf.mxu0
      %501 = vdwg.mxu0
      %502 = vmatprep.subr.bf16.mxu0 0
      %503 = vmatpush1.bf16.msra.mxu0 0
      %504 = vmatprep.subr.bf16.mxu0 0
      %505 = vmatpush1.bf16.msra.mxu0 0
      %506 = vmatprep.subr.bf16.mxu0 0
      %507 = vmatpush1.bf16.msra.mxu0 0
      %508 = vmatprep.subr.bf16.mxu0 0
      %509 = vmatpush1.bf16.msra.mxu0 0
      %510 = vmatprep.subr.bf16.mxu0 0
      %511 = vmatpush1.bf16.msra.mxu0 0
      %512 = vmatprep.subr.bf16.mxu0 0
      %513 = vmatpush1.bf16.msra.mxu0 0
      %514 = vmatprep.subr.bf16.mxu0 %v439
      %515 = vmatpush1.bf16.msra.mxu0 %v436
      %516 = vmatprep.subr.bf16.mxu0 %v223
      %517 = vmatpush1.bf16.msra.mxu0 %v222
      %518 = vmatprep.subr.bf16.mxu0 0
      %519 = vmatpush2.bf16.msra.mxu0 0
      %520 = vmatprep.subr.bf16.mxu0 0
      %521 = vmatpush2.bf16.msra.mxu0 0
      %522 = vmatprep.subr.bf16.mxu0 0
      %523 = vmatpush2.bf16.msra.mxu0 0
      %524 = vmatprep.subr.bf16.mxu0 0
      %525 = vmatpush2.bf16.msra.mxu0 0
      %526 = vmatprep.subr.bf16.mxu0 0
      %527 = vmatpush2.bf16.msra.mxu0 0
      %528 = vmatprep.subr.bf16.mxu0 0
      %529 = vmatpush2.bf16.msra.mxu0 0
      %530 = vmatprep.subr.bf16.mxu0 0
      %531 = vmatpush2.bf16.msra.mxu0 0
      %532 = vmatprep.subr.bf16.mxu0 0
      %533 = vmatpush2.bf16.msra.mxu0 0
      %534 = vmatprep.mubr.bf16.mxu0 0
      %535 = vmatmul.mubr.bf16.gmra.mxu0 %v421
      %v536 = vpop.f32.mrf.mxu0
      %v537 = vadd.f32 %v377, %v536
      %v538 = vpop.f32.mrf.mxu0
      %v539 = vadd.f32 %v379, %v538
      %v540 = vpop.f32.mrf.mxu0
      %v541 = vadd.f32 %v381, %v540
      %v542 = vpop.f32.mrf.mxu0
      %v543 = vadd.f32 %v383, %v542
      %544 = vmatprep.mubr.bf16.mxu0 0
      %545 = vmatmul.mubr.bf16.gmra.mxu0 %v424
      %v546 = vpop.f32.mrf.mxu0
      %v547 = vadd.f32 %v387, %v546
      %v548 = vpop.f32.mrf.mxu0
      %v549 = vadd.f32 %v389, %v548
      %v550 = vpop.f32.mrf.mxu0
      %v551 = vadd.f32 %v391, %v550
      %v552 = vpop.f32.mrf.mxu0
      %v553 = vadd.f32 %v393, %v552
      %554 = vmatprep.mubr.bf16.mxu0 0
      %555 = vmatmul.mubr.bf16.gmra.mxu0 %v427
      %v556 = vpop.f32.mrf.mxu0
      %v557 = vadd.f32 %v397, %v556
      %v558 = vpop.f32.mrf.mxu0
      %v559 = vadd.f32 %v399, %v558
      %v560 = vpop.f32.mrf.mxu0
      %v561 = vpop.f32.mrf.mxu0
      %562 = vdwg.mxu0
      %s563 = scalar_lea.vmem %s1, 40
      %v564 = vld [vmem:[%s563] sm:$0xf]
      %v565 = vld [vmem:[%s563 + $0x4] sm:$0xf]
      %v566 = vld [vmem:[%s563 + $0x8] sm:$0xf]
      %v567 = vld [vmem:[%s563 + $0xc] sm:$0xf]
      %v568 = vld [vmem:[%s563 + $0x10] sm:$0x3]
      %v574 = vunpack.c.l.b16 %v564
      %v575 = vunpack.c.l.b16 %v565
      %v576 = vunpack.c.l.b16 %v566
      %v577 = vunpack.c.l.b16 %v567
      %v578 = vunpack.c.l.b16 %v568
      %v579 = vpack.c.b16 %v575, %v574
      %v580 = vpack.c.b16 %v577, %v576
      %v581 = vpack.c.b16 %v578, %v578
      %582 = vrot.lane.b32.xlu0 %v220, 126
      %v583 = vpop.permute.xlu0 %582
      %584 = vrot.lane.b32.xlu0 %v221, 126
      %v585 = vpop.permute.xlu0 %584
      %586 = vrot.lane.b32.xlu0 %v222, 126
      %v587 = vpop.permute.xlu0 %586
      %588 = vrot.lane.b32.xlu0 %v223, 126
      %v589 = vpop.permute.xlu0 %588
      %590 = vrot.lane.b32.xlu0 %v224, 126
      %v591 = vpop.permute.xlu0 %590
      %592 = vrot.lane.b32.xlu0 %v225, 126
      %v593 = vpop.permute.xlu0 %592
      %594 = vrot.lane.b32.xlu0 %v226, 126
      %v595 = vpop.permute.xlu0 %594
      %596 = vrot.lane.b32.xlu0 %v227, 126
      %v597 = vpop.permute.xlu0 %596
      %vm598 = vcmask 1031168
      %v599 = vsel %vm598, %v583, %v585
      %v600 = vsel %vm598, %v585, %v587
      %v601 = vsel %vm598, %v587, %v589
      %v602 = vsel %vm598, %v591, %v593
      %v603 = vsel %vm598, %v593, %v595
      %v604 = vsel %vm598, %v595, %v597
      %v610 = vsel %vm255, %v579, 0
      %v613 = vsel %vm255, %v580, 0
      %v616 = vsel %vm255, %v581, 0
      %v619 = vand.u32 %v602, %v268
      %v622 = vand.u32 %v603, %v268
      %v625 = vand.u32 %v604, %v268
      %v628 = vand.u32 %v597, %v268
      %630 = vmatprep.subr.bf16.mxu0 0
      %631 = vmatpush1.bf16.msra.mxu0 0
      %632 = vmatprep.subr.bf16.mxu0 0
      %633 = vmatpush1.bf16.msra.mxu0 0
      %634 = vmatprep.subr.bf16.mxu0 0
      %635 = vmatpush1.bf16.msra.mxu0 0
      %636 = vmatprep.subr.bf16.mxu0 0
      %637 = vmatpush1.bf16.msra.mxu0 0
      %638 = vmatprep.subr.bf16.mxu0 0
      %639 = vmatpush1.bf16.msra.mxu0 0
      %640 = vmatprep.subr.bf16.mxu0 0
      %641 = vmatpush1.bf16.msra.mxu0 0
      %642 = vmatprep.subr.bf16.mxu0 %v622
      %643 = vmatpush1.bf16.msra.mxu0 %v619
      %644 = vmatprep.subr.bf16.mxu0 %v600
      %645 = vmatpush1.bf16.msra.mxu0 %v599
      %646 = vmatprep.subr.bf16.mxu0 0
      %647 = vmatpush2.bf16.msra.mxu0 0
      %648 = vmatprep.subr.bf16.mxu0 0
      %649 = vmatpush2.bf16.msra.mxu0 0
      %650 = vmatprep.subr.bf16.mxu0 0
      %651 = vmatpush2.bf16.msra.mxu0 0
      %652 = vmatprep.subr.bf16.mxu0 0
      %653 = vmatpush2.bf16.msra.mxu0 0
      %654 = vmatprep.subr.bf16.mxu0 0
      %655 = vmatpush2.bf16.msra.mxu0 0
      %656 = vmatprep.subr.bf16.mxu0 0
      %657 = vmatpush2.bf16.msra.mxu0 0
      %658 = vmatprep.subr.bf16.mxu0 0
      %659 = vmatpush2.bf16.msra.mxu0 0
      %660 = vmatprep.subr.bf16.mxu0 0
      %661 = vmatpush2.bf16.msra.mxu0 0
      %662 = vmatprep.mubr.bf16.mxu0 0
      %663 = vmatmul.mubr.bf16.gmra.mxu0 %v610
      %v664 = vpop.f32.mrf.mxu0
      %v665 = vadd.f32 0.0, %v664
      %v666 = vpop.f32.mrf.mxu0
      %v667 = vadd.f32 0.0, %v666
      %v668 = vpop.f32.mrf.mxu0
      %v669 = vadd.f32 0.0, %v668
      %v670 = vpop.f32.mrf.mxu0
      %v671 = vadd.f32 0.0, %v670
      %672 = vmatprep.mubr.bf16.mxu0 0
      %673 = vmatmul.mubr.bf16.gmra.mxu0 %v613
      %v674 = vpop.f32.mrf.mxu0
      %v675 = vadd.f32 0.0, %v674
      %v676 = vpop.f32.mrf.mxu0
      %v677 = vadd.f32 0.0, %v676
      %v678 = vpop.f32.mrf.mxu0
      %v679 = vadd.f32 0.0, %v678
      %v680 = vpop.f32.mrf.mxu0
      %v681 = vadd.f32 0.0, %v680
      %682 = vmatprep.mubr.bf16.mxu0 0
      %683 = vmatmul.mubr.bf16.gmra.mxu0 %v616
      %v684 = vpop.f32.mrf.mxu0
      %v685 = vadd.f32 0.0, %v684
      %v686 = vpop.f32.mrf.mxu0
      %v687 = vadd.f32 0.0, %v686
      %v688 = vpop.f32.mrf.mxu0
      %v689 = vpop.f32.mrf.mxu0
      %690 = vdwg.mxu0
      %691 = vmatprep.subr.bf16.mxu0 0
      %692 = vmatpush1.bf16.msra.mxu0 0
      %693 = vmatprep.subr.bf16.mxu0 0
      %694 = vmatpush1.bf16.msra.mxu0 0
      %695 = vmatprep.subr.bf16.mxu0 0
      %696 = vmatpush1.bf16.msra.mxu0 0
      %697 = vmatprep.subr.bf16.mxu0 0
      %698 = vmatpush1.bf16.msra.mxu0 0
      %699 = vmatprep.subr.bf16.mxu0 0
      %700 = vmatpush1.bf16.msra.mxu0 0
      %701 = vmatprep.subr.bf16.mxu0 0
      %702 = vmatpush1.bf16.msra.mxu0 0
      %703 = vmatprep.subr.bf16.mxu0 %v628
      %704 = vmatpush1.bf16.msra.mxu0 %v625
      %705 = vmatprep.subr.bf16.mxu0 %v589
      %706 = vmatpush1.bf16.msra.mxu0 %v601
      %707 = vmatprep.subr.bf16.mxu0 0
      %708 = vmatpush2.bf16.msra.mxu0 0
      %709 = vmatprep.subr.bf16.mxu0 0
      %710 = vmatpush2.bf16.msra.mxu0 0
      %711 = vmatprep.subr.bf16.mxu0 0
      %712 = vmatpush2.bf16.msra.mxu0 0
      %713 = vmatprep.subr.bf16.mxu0 0
      %714 = vmatpush2.bf16.msra.mxu0 0
      %715 = vmatprep.subr.bf16.mxu0 0
      %716 = vmatpush2.bf16.msra.mxu0 0
      %717 = vmatprep.subr.bf16.mxu0 0
      %718 = vmatpush2.bf16.msra.mxu0 0
      %719 = vmatprep.subr.bf16.mxu0 0
      %720 = vmatpush2.bf16.msra.mxu0 0
      %721 = vmatprep.subr.bf16.mxu0 0
      %722 = vmatpush2.bf16.msra.mxu0 0
      %723 = vmatprep.mubr.bf16.mxu0 0
      %724 = vmatmul.mubr.bf16.gmra.mxu0 %v610
      %v725 = vpop.f32.mrf.mxu0
      %v726 = vadd.f32 0.0, %v725
      %v727 = vpop.f32.mrf.mxu0
      %v728 = vadd.f32 0.0, %v727
      %v729 = vpop.f32.mrf.mxu0
      %v730 = vadd.f32 0.0, %v729
      %v731 = vpop.f32.mrf.mxu0
      %v732 = vadd.f32 0.0, %v731
      %733 = vmatprep.mubr.bf16.mxu0 0
      %734 = vmatmul.mubr.bf16.gmra.mxu0 %v613
      %v735 = vpop.f32.mrf.mxu0
      %v736 = vadd.f32 0.0, %v735
      %v737 = vpop.f32.mrf.mxu0
      %v738 = vadd.f32 0.0, %v737
      %v739 = vpop.f32.mrf.mxu0
      %v740 = vadd.f32 0.0, %v739
      %v741 = vpop.f32.mrf.mxu0
      %v742 = vadd.f32 0.0, %v741
      %743 = vmatprep.mubr.bf16.mxu0 0
      %744 = vmatmul.mubr.bf16.gmra.mxu0 %v616
      %v745 = vpop.f32.mrf.mxu0
      %v746 = vadd.f32 0.0, %v745
      %v747 = vpop.f32.mrf.mxu0
      %v748 = vadd.f32 0.0, %v747
      %v749 = vpop.f32.mrf.mxu0
      %v750 = vpop.f32.mrf.mxu0
      %751 = vdwg.mxu0
      %v752 = vadd.f32 %v476, %v665
      %v753 = vadd.f32 %v478, %v667
      %v754 = vadd.f32 %v537, %v726
      %v755 = vadd.f32 %v539, %v728
      %v756 = vadd.f32 %v480, %v669
      %v757 = vadd.f32 %v482, %v671
      %v758 = vadd.f32 %v541, %v730
      %v759 = vadd.f32 %v543, %v732
      %v760 = vadd.f32 %v486, %v675
      %v761 = vadd.f32 %v488, %v677
      %v762 = vadd.f32 %v547, %v736
      %v763 = vadd.f32 %v549, %v738
      %v764 = vadd.f32 %v490, %v679
      %v765 = vadd.f32 %v492, %v681
      %v766 = vadd.f32 %v551, %v740
      %v767 = vadd.f32 %v553, %v742
      %v768 = vadd.f32 %v496, %v685
      %v769 = vadd.f32 %v498, %v687
      %v770 = vadd.f32 %v557, %v746
      %v771 = vadd.f32 %v559, %v748
      %s772 = scalar_lea.vmem %s1, 60
      %v773 = vld [vmem:[%s772] sm:$0xf]
      %v774 = vld [vmem:[%s772 + $0x4] sm:$0xf]
      %v775 = vld [vmem:[%s772 + $0x8] sm:$0xf]
      %v776 = vld [vmem:[%s772 + $0xc] sm:$0xf]
      %v777 = vld [vmem:[%s772 + $0x10] sm:$0x3]
      %v783 = vunpack.c.l.b16 %v773
      %v784 = vunpack.c.l.b16 %v774
      %v785 = vunpack.c.l.b16 %v775
      %v786 = vunpack.c.l.b16 %v776
      %v787 = vunpack.c.l.b16 %v777
      %v788 = vpack.c.b16 %v784, %v783
      %v789 = vpack.c.b16 %v786, %v785
      %v790 = vpack.c.b16 %v787, %v787
      %791 = vrot.lane.b32.xlu0 %v220, 125
      %v792 = vpop.permute.xlu0 %791
      %793 = vrot.lane.b32.xlu0 %v221, 125
      %v794 = vpop.permute.xlu0 %793
      %795 = vrot.lane.b32.xlu0 %v222, 125
      %v796 = vpop.permute.xlu0 %795
      %797 = vrot.lane.b32.xlu0 %v223, 125
      %v798 = vpop.permute.xlu0 %797
      %799 = vrot.lane.b32.xlu0 %v224, 125
      %v800 = vpop.permute.xlu0 %799
      %801 = vrot.lane.b32.xlu0 %v225, 125
      %v802 = vpop.permute.xlu0 %801
      %803 = vrot.lane.b32.xlu0 %v226, 125
      %v804 = vpop.permute.xlu0 %803
      %805 = vrot.lane.b32.xlu0 %v227, 125
      %v806 = vpop.permute.xlu0 %805
      %vm807 = vcmask 1022976
      %v808 = vsel %vm807, %v792, %v794
      %v809 = vsel %vm807, %v794, %v796
      %v810 = vsel %vm807, %v796, %v798
      %v811 = vsel %vm807, %v800, %v802
      %v812 = vsel %vm807, %v802, %v804
      %v813 = vsel %vm807, %v804, %v806
      %v819 = vsel %vm255, %v788, 0
      %v822 = vsel %vm255, %v789, 0
      %v825 = vsel %vm255, %v790, 0
      %v828 = vand.u32 %v811, %v268
      %v831 = vand.u32 %v812, %v268
      %v834 = vand.u32 %v813, %v268
      %v837 = vand.u32 %v806, %v268
      %839 = vmatprep.subr.bf16.mxu0 0
      %840 = vmatpush1.bf16.msra.mxu0 0
      %841 = vmatprep.subr.bf16.mxu0 0
      %842 = vmatpush1.bf16.msra.mxu0 0
      %843 = vmatprep.subr.bf16.mxu0 0
      %844 = vmatpush1.bf16.msra.mxu0 0
      %845 = vmatprep.subr.bf16.mxu0 0
      %846 = vmatpush1.bf16.msra.mxu0 0
      %847 = vmatprep.subr.bf16.mxu0 0
      %848 = vmatpush1.bf16.msra.mxu0 0
      %849 = vmatprep.subr.bf16.mxu0 0
      %850 = vmatpush1.bf16.msra.mxu0 0
      %851 = vmatprep.subr.bf16.mxu0 %v831
      %852 = vmatpush1.bf16.msra.mxu0 %v828
      %853 = vmatprep.subr.bf16.mxu0 %v809
      %854 = vmatpush1.bf16.msra.mxu0 %v808
      %855 = vmatprep.subr.bf16.mxu0 0
      %856 = vmatpush2.bf16.msra.mxu0 0
      %857 = vmatprep.subr.bf16.mxu0 0
      %858 = vmatpush2.bf16.msra.mxu0 0
      %859 = vmatprep.subr.bf16.mxu0 0
      %860 = vmatpush2.bf16.msra.mxu0 0
      %861 = vmatprep.subr.bf16.mxu0 0
      %862 = vmatpush2.bf16.msra.mxu0 0
      %863 = vmatprep.subr.bf16.mxu0 0
      %864 = vmatpush2.bf16.msra.mxu0 0
      %865 = vmatprep.subr.bf16.mxu0 0
      %866 = vmatpush2.bf16.msra.mxu0 0
      %867 = vmatprep.subr.bf16.mxu0 0
      %868 = vmatpush2.bf16.msra.mxu0 0
      %869 = vmatprep.subr.bf16.mxu0 0
      %870 = vmatpush2.bf16.msra.mxu0 0
      %871 = vmatprep.mubr.bf16.mxu0 0
      %872 = vmatmul.mubr.bf16.gmra.mxu0 %v819
      %v873 = vpop.f32.mrf.mxu0
      %v874 = vadd.f32 0.0, %v873
      %v875 = vpop.f32.mrf.mxu0
      %v876 = vadd.f32 0.0, %v875
      %v877 = vpop.f32.mrf.mxu0
      %v878 = vadd.f32 0.0, %v877
      %v879 = vpop.f32.mrf.mxu0
      %v880 = vadd.f32 0.0, %v879
      %881 = vmatprep.mubr.bf16.mxu0 0
      %882 = vmatmul.mubr.bf16.gmra.mxu0 %v822
      %v883 = vpop.f32.mrf.mxu0
      %v884 = vadd.f32 0.0, %v883
      %v885 = vpop.f32.mrf.mxu0
      %v886 = vadd.f32 0.0, %v885
      %v887 = vpop.f32.mrf.mxu0
      %v888 = vadd.f32 0.0, %v887
      %v889 = vpop.f32.mrf.mxu0
      %v890 = vadd.f32 0.0, %v889
      %891 = vmatprep.mubr.bf16.mxu0 0
      %892 = vmatmul.mubr.bf16.gmra.mxu0 %v825
      %v893 = vpop.f32.mrf.mxu0
      %v894 = vadd.f32 0.0, %v893
      %v895 = vpop.f32.mrf.mxu0
      %v896 = vadd.f32 0.0, %v895
      %v897 = vpop.f32.mrf.mxu0
      %v898 = vpop.f32.mrf.mxu0
      %899 = vdwg.mxu0
      %900 = vmatprep.subr.bf16.mxu0 0
      %901 = vmatpush1.bf16.msra.mxu0 0
      %902 = vmatprep.subr.bf16.mxu0 0
      %903 = vmatpush1.bf16.msra.mxu0 0
      %904 = vmatprep.subr.bf16.mxu0 0
      %905 = vmatpush1.bf16.msra.mxu0 0
      %906 = vmatprep.subr.bf16.mxu0 0
      %907 = vmatpush1.bf16.msra.mxu0 0
      %908 = vmatprep.subr.bf16.mxu0 0
      %909 = vmatpush1.bf16.msra.mxu0 0
      %910 = vmatprep.subr.bf16.mxu0 0
      %911 = vmatpush1.bf16.msra.mxu0 0
      %912 = vmatprep.subr.bf16.mxu0 %v837
      %913 = vmatpush1.bf16.msra.mxu0 %v834
      %914 = vmatprep.subr.bf16.mxu0 %v798
      %915 = vmatpush1.bf16.msra.mxu0 %v810
      %916 = vmatprep.subr.bf16.mxu0 0
      %917 = vmatpush2.bf16.msra.mxu0 0
      %918 = vmatprep.subr.bf16.mxu0 0
      %919 = vmatpush2.bf16.msra.mxu0 0
      %920 = vmatprep.subr.bf16.mxu0 0
      %921 = vmatpush2.bf16.msra.mxu0 0
      %922 = vmatprep.subr.bf16.mxu0 0
      %923 = vmatpush2.bf16.msra.mxu0 0
      %924 = vmatprep.subr.bf16.mxu0 0
      %925 = vmatpush2.bf16.msra.mxu0 0
      %926 = vmatprep.subr.bf16.mxu0 0
      %927 = vmatpush2.bf16.msra.mxu0 0
      %928 = vmatprep.subr.bf16.mxu0 0
      %929 = vmatpush2.bf16.msra.mxu0 0
      %930 = vmatprep.subr.bf16.mxu0 0
      %931 = vmatpush2.bf16.msra.mxu0 0
      %932 = vmatprep.mubr.bf16.mxu0 0
      %933 = vmatmul.mubr.bf16.gmra.mxu0 %v819
      %v934 = vpop.f32.mrf.mxu0
      %v935 = vadd.f32 0.0, %v934
      %v936 = vpop.f32.mrf.mxu0
      %v937 = vadd.f32 0.0, %v936
      %v938 = vpop.f32.mrf.mxu0
      %v939 = vadd.f32 0.0, %v938
      %v940 = vpop.f32.mrf.mxu0
      %v941 = vadd.f32 0.0, %v940
      %942 = vmatprep.mubr.bf16.mxu0 0
      %943 = vmatmul.mubr.bf16.gmra.mxu0 %v822
      %v944 = vpop.f32.mrf.mxu0
      %v945 = vadd.f32 0.0, %v944
      %v946 = vpop.f32.mrf.mxu0
      %v947 = vadd.f32 0.0, %v946
      %v948 = vpop.f32.mrf.mxu0
      %v949 = vadd.f32 0.0, %v948
      %v950 = vpop.f32.mrf.mxu0
      %v951 = vadd.f32 0.0, %v950
      %952 = vmatprep.mubr.bf16.mxu0 0
      %953 = vmatmul.mubr.bf16.gmra.mxu0 %v825
      %v954 = vpop.f32.mrf.mxu0
      %v955 = vadd.f32 0.0, %v954
      %v956 = vpop.f32.mrf.mxu0
      %v957 = vadd.f32 0.0, %v956
      %v958 = vpop.f32.mrf.mxu0
      %v959 = vpop.f32.mrf.mxu0
      %960 = vdwg.mxu0
      %v961 = vadd.f32 %v752, %v874
      %v962 = vadd.f32 %v753, %v876
      %v963 = vadd.f32 %v754, %v935
      %v964 = vadd.f32 %v755, %v937
      %v965 = vadd.f32 %v756, %v878
      %v966 = vadd.f32 %v757, %v880
      %v967 = vadd.f32 %v758, %v939
      %v968 = vadd.f32 %v759, %v941
      %v969 = vadd.f32 %v760, %v884
      %v970 = vadd.f32 %v761, %v886
      %v971 = vadd.f32 %v762, %v945
      %v972 = vadd.f32 %v763, %v947
      %v973 = vadd.f32 %v764, %v888
      %v974 = vadd.f32 %v765, %v890
      %v975 = vadd.f32 %v766, %v949
      %v976 = vadd.f32 %v767, %v951
      %v977 = vadd.f32 %v768, %v894
      %v978 = vadd.f32 %v769, %v896
      %v979 = vadd.f32 %v770, %v955
      %v980 = vadd.f32 %v771, %v957
      %s981 = scalar_lea.vmem %s1, 80
      %v982 = vld [vmem:[%s981] sm:$0xf]
      %v983 = vld [vmem:[%s981 + $0x4] sm:$0xf]
      %v984 = vld [vmem:[%s981 + $0x8] sm:$0xf]
      %v985 = vld [vmem:[%s981 + $0xc] sm:$0xf]
      %v986 = vld [vmem:[%s981 + $0x10] sm:$0x3]
      %v992 = vunpack.c.l.b16 %v982
      %v993 = vunpack.c.l.b16 %v983
      %v994 = vunpack.c.l.b16 %v984
      %v995 = vunpack.c.l.b16 %v985
      %v996 = vunpack.c.l.b16 %v986
      %v997 = vpack.c.b16 %v993, %v992
      %v998 = vpack.c.b16 %v995, %v994
      %v999 = vpack.c.b16 %v996, %v996
      %1000 = vrot.lane.b32.xlu0 %v220, 124
      %v1001 = vpop.permute.xlu0 %1000
      %1002 = vrot.lane.b32.xlu0 %v221, 124
      %v1003 = vpop.permute.xlu0 %1002
      %1004 = vrot.lane.b32.xlu0 %v222, 124
      %v1005 = vpop.permute.xlu0 %1004
      %1006 = vrot.lane.b32.xlu0 %v223, 124
      %v1007 = vpop.permute.xlu0 %1006
      %1008 = vrot.lane.b32.xlu0 %v224, 124
      %v1009 = vpop.permute.xlu0 %1008
      %1010 = vrot.lane.b32.xlu0 %v225, 124
      %v1011 = vpop.permute.xlu0 %1010
      %1012 = vrot.lane.b32.xlu0 %v226, 124
      %v1013 = vpop.permute.xlu0 %1012
      %1014 = vrot.lane.b32.xlu0 %v227, 124
      %v1015 = vpop.permute.xlu0 %1014
      %vm1016 = vcmask 1014784
      %v1017 = vsel %vm1016, %v1001, %v1003
      %v1018 = vsel %vm1016, %v1003, %v1005
      %v1019 = vsel %vm1016, %v1005, %v1007
      %v1020 = vsel %vm1016, %v1009, %v1011
      %v1021 = vsel %vm1016, %v1011, %v1013
      %v1022 = vsel %vm1016, %v1013, %v1015
      %v1028 = vsel %vm255, %v997, 0
      %v1031 = vsel %vm255, %v998, 0
      %v1034 = vsel %vm255, %v999, 0
      %v1037 = vand.u32 %v1020, %v268
      %v1040 = vand.u32 %v1021, %v268
      %v1043 = vand.u32 %v1022, %v268
      %v1046 = vand.u32 %v1015, %v268
      %1048 = vmatprep.subr.bf16.mxu0 0
      %1049 = vmatpush1.bf16.msra.mxu0 0
      %1050 = vmatprep.subr.bf16.mxu0 0
      %1051 = vmatpush1.bf16.msra.mxu0 0
      %1052 = vmatprep.subr.bf16.mxu0 0
      %1053 = vmatpush1.bf16.msra.mxu0 0
      %1054 = vmatprep.subr.bf16.mxu0 0
      %1055 = vmatpush1.bf16.msra.mxu0 0
      %1056 = vmatprep.subr.bf16.mxu0 0
      %1057 = vmatpush1.bf16.msra.mxu0 0
      %1058 = vmatprep.subr.bf16.mxu0 0
      %1059 = vmatpush1.bf16.msra.mxu0 0
      %1060 = vmatprep.subr.bf16.mxu0 %v1040
      %1061 = vmatpush1.bf16.msra.mxu0 %v1037
      %1062 = vmatprep.subr.bf16.mxu0 %v1018
      %1063 = vmatpush1.bf16.msra.mxu0 %v1017
      %1064 = vmatprep.subr.bf16.mxu0 0
      %1065 = vmatpush2.bf16.msra.mxu0 0
      %1066 = vmatprep.subr.bf16.mxu0 0
      %1067 = vmatpush2.bf16.msra.mxu0 0
      %1068 = vmatprep.subr.bf16.mxu0 0
      %1069 = vmatpush2.bf16.msra.mxu0 0
      %1070 = vmatprep.subr.bf16.mxu0 0
      %1071 = vmatpush2.bf16.msra.mxu0 0
      %1072 = vmatprep.subr.bf16.mxu0 0
      %1073 = vmatpush2.bf16.msra.mxu0 0
      %1074 = vmatprep.subr.bf16.mxu0 0
      %1075 = vmatpush2.bf16.msra.mxu0 0
      %1076 = vmatprep.subr.bf16.mxu0 0
      %1077 = vmatpush2.bf16.msra.mxu0 0
      %1078 = vmatprep.subr.bf16.mxu0 0
      %1079 = vmatpush2.bf16.msra.mxu0 0
      %1080 = vmatprep.mubr.bf16.mxu0 0
      %1081 = vmatmul.mubr.bf16.gmra.mxu0 %v1028
      %v1082 = vpop.f32.mrf.mxu0
      %v1083 = vadd.f32 0.0, %v1082
      %v1084 = vpop.f32.mrf.mxu0
      %v1085 = vadd.f32 0.0, %v1084
      %v1086 = vpop.f32.mrf.mxu0
      %v1087 = vadd.f32 0.0, %v1086
      %v1088 = vpop.f32.mrf.mxu0
      %v1089 = vadd.f32 0.0, %v1088
      %1090 = vmatprep.mubr.bf16.mxu0 0
      %1091 = vmatmul.mubr.bf16.gmra.mxu0 %v1031
      %v1092 = vpop.f32.mrf.mxu0
      %v1093 = vadd.f32 0.0, %v1092
      %v1094 = vpop.f32.mrf.mxu0
      %v1095 = vadd.f32 0.0, %v1094
      %v1096 = vpop.f32.mrf.mxu0
      %v1097 = vadd.f32 0.0, %v1096
      %v1098 = vpop.f32.mrf.mxu0
      %v1099 = vadd.f32 0.0, %v1098
      %1100 = vmatprep.mubr.bf16.mxu0 0
      %1101 = vmatmul.mubr.bf16.gmra.mxu0 %v1034
      %v1102 = vpop.f32.mrf.mxu0
      %v1103 = vadd.f32 0.0, %v1102
      %v1104 = vpop.f32.mrf.mxu0
      %v1105 = vadd.f32 0.0, %v1104
      %v1106 = vpop.f32.mrf.mxu0
      %v1107 = vpop.f32.mrf.mxu0
      %1108 = vdwg.mxu0
      %1109 = vmatprep.subr.bf16.mxu0 0
      %1110 = vmatpush1.bf16.msra.mxu0 0
      %1111 = vmatprep.subr.bf16.mxu0 0
      %1112 = vmatpush1.bf16.msra.mxu0 0
      %1113 = vmatprep.subr.bf16.mxu0 0
      %1114 = vmatpush1.bf16.msra.mxu0 0
      %1115 = vmatprep.subr.bf16.mxu0 0
      %1116 = vmatpush1.bf16.msra.mxu0 0
      %1117 = vmatprep.subr.bf16.mxu0 0
      %1118 = vmatpush1.bf16.msra.mxu0 0
      %1119 = vmatprep.subr.bf16.mxu0 0
      %1120 = vmatpush1.bf16.msra.mxu0 0
      %1121 = vmatprep.subr.bf16.mxu0 %v1046
      %1122 = vmatpush1.bf16.msra.mxu0 %v1043
      %1123 = vmatprep.subr.bf16.mxu0 %v1007
      %1124 = vmatpush1.bf16.msra.mxu0 %v1019
      %1125 = vmatprep.subr.bf16.mxu0 0
      %1126 = vmatpush2.bf16.msra.mxu0 0
      %1127 = vmatprep.subr.bf16.mxu0 0
      %1128 = vmatpush2.bf16.msra.mxu0 0
      %1129 = vmatprep.subr.bf16.mxu0 0
      %1130 = vmatpush2.bf16.msra.mxu0 0
      %1131 = vmatprep.subr.bf16.mxu0 0
      %1132 = vmatpush2.bf16.msra.mxu0 0
      %1133 = vmatprep.subr.bf16.mxu0 0
      %1134 = vmatpush2.bf16.msra.mxu0 0
      %1135 = vmatprep.subr.bf16.mxu0 0
      %1136 = vmatpush2.bf16.msra.mxu0 0
      %1137 = vmatprep.subr.bf16.mxu0 0
      %1138 = vmatpush2.bf16.msra.mxu0 0
      %1139 = vmatprep.subr.bf16.mxu0 0
      %1140 = vmatpush2.bf16.msra.mxu0 0
      %1141 = vmatprep.mubr.bf16.mxu0 0
      %1142 = vmatmul.mubr.bf16.gmra.mxu0 %v1028
      %v1143 = vpop.f32.mrf.mxu0
      %v1144 = vadd.f32 0.0, %v1143
      %v1145 = vpop.f32.mrf.mxu0
      %v1146 = vadd.f32 0.0, %v1145
      %v1147 = vpop.f32.mrf.mxu0
      %v1148 = vadd.f32 0.0, %v1147
      %v1149 = vpop.f32.mrf.mxu0
      %v1150 = vadd.f32 0.0, %v1149
      %1151 = vmatprep.mubr.bf16.mxu0 0
      %1152 = vmatmul.mubr.bf16.gmra.mxu0 %v1031
      %v1153 = vpop.f32.mrf.mxu0
      %v1154 = vadd.f32 0.0, %v1153
      %v1155 = vpop.f32.mrf.mxu0
      %v1156 = vadd.f32 0.0, %v1155
      %v1157 = vpop.f32.mrf.mxu0
      %v1158 = vadd.f32 0.0, %v1157
      %v1159 = vpop.f32.mrf.mxu0
      %v1160 = vadd.f32 0.0, %v1159
      %1161 = vmatprep.mubr.bf16.mxu0 0
      %1162 = vmatmul.mubr.bf16.gmra.mxu0 %v1034
      %v1163 = vpop.f32.mrf.mxu0
      %v1164 = vadd.f32 0.0, %v1163
      %v1165 = vpop.f32.mrf.mxu0
      %v1166 = vadd.f32 0.0, %v1165
      %v1167 = vpop.f32.mrf.mxu0
      %v1168 = vpop.f32.mrf.mxu0
      %1169 = vdwg.mxu0
      %v1170 = vadd.f32 %v961, %v1083
      %v1171 = vadd.f32 %v962, %v1085
      %v1172 = vadd.f32 %v963, %v1144
      %v1173 = vadd.f32 %v964, %v1146
      %v1174 = vadd.f32 %v965, %v1087
      %v1175 = vadd.f32 %v966, %v1089
      %v1176 = vadd.f32 %v967, %v1148
      %v1177 = vadd.f32 %v968, %v1150
      %v1178 = vadd.f32 %v969, %v1093
      %v1179 = vadd.f32 %v970, %v1095
      %v1180 = vadd.f32 %v971, %v1154
      %v1181 = vadd.f32 %v972, %v1156
      %v1182 = vadd.f32 %v973, %v1097
      %v1183 = vadd.f32 %v974, %v1099
      %v1184 = vadd.f32 %v975, %v1158
      %v1185 = vadd.f32 %v976, %v1160
      %v1186 = vadd.f32 %v977, %v1103
      %v1187 = vadd.f32 %v978, %v1105
      %v1188 = vadd.f32 %v979, %v1164
      %v1189 = vadd.f32 %v980, %v1166
      %s1190 = scalar_lea.vmem %s1, 100
      %v1191 = vld [vmem:[%s1190] sm:$0xf]
      %v1192 = vld [vmem:[%s1190 + $0x4] sm:$0xf]
      %v1193 = vld [vmem:[%s1190 + $0x8] sm:$0xf]
      %v1194 = vld [vmem:[%s1190 + $0xc] sm:$0xf]
      %v1195 = vld [vmem:[%s1190 + $0x10] sm:$0x3]
      %v1201 = vunpack.c.l.b16 %v1191
      %v1202 = vunpack.c.l.b16 %v1192
      %v1203 = vunpack.c.l.b16 %v1193
      %v1204 = vunpack.c.l.b16 %v1194
      %v1205 = vunpack.c.l.b16 %v1195
      %v1206 = vpack.c.b16 %v1202, %v1201
      %v1207 = vpack.c.b16 %v1204, %v1203
      %v1208 = vpack.c.b16 %v1205, %v1205
      %1209 = vrot.lane.b32.xlu0 %v220, 123
      %v1210 = vpop.permute.xlu0 %1209
      %1211 = vrot.lane.b32.xlu0 %v221, 123
      %v1212 = vpop.permute.xlu0 %1211
      %1213 = vrot.lane.b32.xlu0 %v222, 123
      %v1214 = vpop.permute.xlu0 %1213
      %1215 = vrot.lane.b32.xlu0 %v223, 123
      %v1216 = vpop.permute.xlu0 %1215
      %1217 = vrot.lane.b32.xlu0 %v224, 123
      %v1218 = vpop.permute.xlu0 %1217
      %1219 = vrot.lane.b32.xlu0 %v225, 123
      %v1220 = vpop.permute.xlu0 %1219
      %1221 = vrot.lane.b32.xlu0 %v226, 123
      %v1222 = vpop.permute.xlu0 %1221
      %1223 = vrot.lane.b32.xlu0 %v227, 123
      %v1224 = vpop.permute.xlu0 %1223
      %vm1225 = vcmask 1006592
      %v1226 = vsel %vm1225, %v1210, %v1212
      %v1227 = vsel %vm1225, %v1212, %v1214
      %v1228 = vsel %vm1225, %v1214, %v1216
      %v1229 = vsel %vm1225, %v1218, %v1220
      %v1230 = vsel %vm1225, %v1220, %v1222
      %v1231 = vsel %vm1225, %v1222, %v1224
      %v1237 = vsel %vm255, %v1206, 0
      %v1240 = vsel %vm255, %v1207, 0
      %v1243 = vsel %vm255, %v1208, 0
      %v1246 = vand.u32 %v1229, %v268
      %v1249 = vand.u32 %v1230, %v268
      %v1252 = vand.u32 %v1231, %v268
      %v1255 = vand.u32 %v1224, %v268
      %1257 = vmatprep.subr.bf16.mxu0 0
      %1258 = vmatpush1.bf16.msra.mxu0 0
      %1259 = vmatprep.subr.bf16.mxu0 0
      %1260 = vmatpush1.bf16.msra.mxu0 0
      %1261 = vmatprep.subr.bf16.mxu0 0
      %1262 = vmatpush1.bf16.msra.mxu0 0
      %1263 = vmatprep.subr.bf16.mxu0 0
      %1264 = vmatpush1.bf16.msra.mxu0 0
      %1265 = vmatprep.subr.bf16.mxu0 0
      %1266 = vmatpush1.bf16.msra.mxu0 0
      %1267 = vmatprep.subr.bf16.mxu0 0
      %1268 = vmatpush1.bf16.msra.mxu0 0
      %1269 = vmatprep.subr.bf16.mxu0 %v1249
      %1270 = vmatpush1.bf16.msra.mxu0 %v1246
      %1271 = vmatprep.subr.bf16.mxu0 %v1227
      %1272 = vmatpush1.bf16.msra.mxu0 %v1226
      %1273 = vmatprep.subr.bf16.mxu0 0
      %1274 = vmatpush2.bf16.msra.mxu0 0
      %1275 = vmatprep.subr.bf16.mxu0 0
      %1276 = vmatpush2.bf16.msra.mxu0 0
      %1277 = vmatprep.subr.bf16.mxu0 0
      %1278 = vmatpush2.bf16.msra.mxu0 0
      %1279 = vmatprep.subr.bf16.mxu0 0
      %1280 = vmatpush2.bf16.msra.mxu0 0
      %1281 = vmatprep.subr.bf16.mxu0 0
      %1282 = vmatpush2.bf16.msra.mxu0 0
      %1283 = vmatprep.subr.bf16.mxu0 0
      %1284 = vmatpush2.bf16.msra.mxu0 0
      %1285 = vmatprep.subr.bf16.mxu0 0
      %1286 = vmatpush2.bf16.msra.mxu0 0
      %1287 = vmatprep.subr.bf16.mxu0 0
      %1288 = vmatpush2.bf16.msra.mxu0 0
      %1289 = vmatprep.mubr.bf16.mxu0 0
      %1290 = vmatmul.mubr.bf16.gmra.mxu0 %v1237
      %v1291 = vpop.f32.mrf.mxu0
      %v1292 = vadd.f32 0.0, %v1291
      %v1293 = vpop.f32.mrf.mxu0
      %v1294 = vadd.f32 0.0, %v1293
      %v1295 = vpop.f32.mrf.mxu0
      %v1296 = vadd.f32 0.0, %v1295
      %v1297 = vpop.f32.mrf.mxu0
      %v1298 = vadd.f32 0.0, %v1297
      %1299 = vmatprep.mubr.bf16.mxu0 0
      %1300 = vmatmul.mubr.bf16.gmra.mxu0 %v1240
      %v1301 = vpop.f32.mrf.mxu0
      %v1302 = vadd.f32 0.0, %v1301
      %v1303 = vpop.f32.mrf.mxu0
      %v1304 = vadd.f32 0.0, %v1303
      %v1305 = vpop.f32.mrf.mxu0
      %v1306 = vadd.f32 0.0, %v1305
      %v1307 = vpop.f32.mrf.mxu0
      %v1308 = vadd.f32 0.0, %v1307
      %1309 = vmatprep.mubr.bf16.mxu0 0
      %1310 = vmatmul.mubr.bf16.gmra.mxu0 %v1243
      %v1311 = vpop.f32.mrf.mxu0
      %v1312 = vadd.f32 0.0, %v1311
      %v1313 = vpop.f32.mrf.mxu0
      %v1314 = vadd.f32 0.0, %v1313
      %v1315 = vpop.f32.mrf.mxu0
      %v1316 = vpop.f32.mrf.mxu0
      %1317 = vdwg.mxu0
      %1318 = vmatprep.subr.bf16.mxu0 0
      %1319 = vmatpush1.bf16.msra.mxu0 0
      %1320 = vmatprep.subr.bf16.mxu0 0
      %1321 = vmatpush1.bf16.msra.mxu0 0
      %1322 = vmatprep.subr.bf16.mxu0 0
      %1323 = vmatpush1.bf16.msra.mxu0 0
      %1324 = vmatprep.subr.bf16.mxu0 0
      %1325 = vmatpush1.bf16.msra.mxu0 0
      %1326 = vmatprep.subr.bf16.mxu0 0
      %1327 = vmatpush1.bf16.msra.mxu0 0
      %1328 = vmatprep.subr.bf16.mxu0 0
      %1329 = vmatpush1.bf16.msra.mxu0 0
      %1330 = vmatprep.subr.bf16.mxu0 %v1255
      %1331 = vmatpush1.bf16.msra.mxu0 %v1252
      %1332 = vmatprep.subr.bf16.mxu0 %v1216
      %1333 = vmatpush1.bf16.msra.mxu0 %v1228
      %1334 = vmatprep.subr.bf16.mxu0 0
      %1335 = vmatpush2.bf16.msra.mxu0 0
      %1336 = vmatprep.subr.bf16.mxu0 0
      %1337 = vmatpush2.bf16.msra.mxu0 0
      %1338 = vmatprep.subr.bf16.mxu0 0
      %1339 = vmatpush2.bf16.msra.mxu0 0
      %1340 = vmatprep.subr.bf16.mxu0 0
      %1341 = vmatpush2.bf16.msra.mxu0 0
      %1342 = vmatprep.subr.bf16.mxu0 0
      %1343 = vmatpush2.bf16.msra.mxu0 0
      %1344 = vmatprep.subr.bf16.mxu0 0
      %1345 = vmatpush2.bf16.msra.mxu0 0
      %1346 = vmatprep.subr.bf16.mxu0 0
      %1347 = vmatpush2.bf16.msra.mxu0 0
      %1348 = vmatprep.subr.bf16.mxu0 0
      %1349 = vmatpush2.bf16.msra.mxu0 0
      %1350 = vmatprep.mubr.bf16.mxu0 0
      %1351 = vmatmul.mubr.bf16.gmra.mxu0 %v1237
      %v1352 = vpop.f32.mrf.mxu0
      %v1353 = vadd.f32 0.0, %v1352
      %v1354 = vpop.f32.mrf.mxu0
      %v1355 = vadd.f32 0.0, %v1354
      %v1356 = vpop.f32.mrf.mxu0
      %v1357 = vadd.f32 0.0, %v1356
      %v1358 = vpop.f32.mrf.mxu0
      %v1359 = vadd.f32 0.0, %v1358
      %1360 = vmatprep.mubr.bf16.mxu0 0
      %1361 = vmatmul.mubr.bf16.gmra.mxu0 %v1240
      %v1362 = vpop.f32.mrf.mxu0
      %v1363 = vadd.f32 0.0, %v1362
      %v1364 = vpop.f32.mrf.mxu0
      %v1365 = vadd.f32 0.0, %v1364
      %v1366 = vpop.f32.mrf.mxu0
      %v1367 = vadd.f32 0.0, %v1366
      %v1368 = vpop.f32.mrf.mxu0
      %v1369 = vadd.f32 0.0, %v1368
      %1370 = vmatprep.mubr.bf16.mxu0 0
      %1371 = vmatmul.mubr.bf16.gmra.mxu0 %v1243
      %v1372 = vpop.f32.mrf.mxu0
      %v1373 = vadd.f32 0.0, %v1372
      %v1374 = vpop.f32.mrf.mxu0
      %v1375 = vadd.f32 0.0, %v1374
      %v1376 = vpop.f32.mrf.mxu0
      %v1377 = vpop.f32.mrf.mxu0
      %1378 = vdwg.mxu0
      %v1379 = vadd.f32 %v1170, %v1292
      %v1380 = vadd.f32 %v1171, %v1294
      %v1381 = vadd.f32 %v1172, %v1353
      %v1382 = vadd.f32 %v1173, %v1355
      %v1383 = vadd.f32 %v1174, %v1296
      %v1384 = vadd.f32 %v1175, %v1298
      %v1385 = vadd.f32 %v1176, %v1357
      %v1386 = vadd.f32 %v1177, %v1359
      %v1387 = vadd.f32 %v1178, %v1302
      %v1388 = vadd.f32 %v1179, %v1304
      %v1389 = vadd.f32 %v1180, %v1363
      %v1390 = vadd.f32 %v1181, %v1365
      %v1391 = vadd.f32 %v1182, %v1306
      %v1392 = vadd.f32 %v1183, %v1308
      %v1393 = vadd.f32 %v1184, %v1367
      %v1394 = vadd.f32 %v1185, %v1369
      %v1395 = vadd.f32 %v1186, %v1312
      %v1396 = vadd.f32 %v1187, %v1314
      %v1397 = vadd.f32 %v1188, %v1373
      %v1398 = vadd.f32 %v1189, %v1375
      %v1399 = vld [vmem:[%s2] sm:$0xff]
      %v1400 = vld [vmem:[%s2 + $0x8] sm:$0xff]
      %v1401 = vld [vmem:[%s2 + $0x10] sm:$0xff]
      %v1402 = vld [vmem:[%s2 + $0x18] sm:$0xff]
      %v1403 = vld [vmem:[%s2 + $0x20] sm:$0xf]
      %1405 = vset.pattern.permute.xlu0 0
      %1406 = vperm.xlu0 %1405, %v1399
      %v1407 = vpop.permute.xlu0 %1406
      %1410 = vset.pattern.permute.xlu0 0
      %1411 = vperm.xlu0 %1410, %v1400
      %v1412 = vpop.permute.xlu0 %1411
      %1415 = vset.pattern.permute.xlu0 0
      %1416 = vperm.xlu0 %1415, %v1401
      %v1417 = vpop.permute.xlu0 %1416
      %1420 = vset.pattern.permute.xlu0 0
      %1421 = vperm.xlu0 %1420, %v1402
      %v1422 = vpop.permute.xlu0 %1421
      %1425 = vset.pattern.permute.xlu0 0
      %1426 = vperm.xlu0 %1425, %v1403
      %v1427 = vpop.permute.xlu0 %1426
      %v1429 = vadd.f32 %v1379, %v1407
      %v1430 = vadd.f32 %v1380, %v1407
      %v1431 = vadd.f32 %v1381, %v1407
      %v1432 = vadd.f32 %v1382, %v1407
      %v1433 = vadd.f32 %v1383, %v1412
      %v1434 = vadd.f32 %v1384, %v1412
      %v1435 = vadd.f32 %v1385, %v1412
      %v1436 = vadd.f32 %v1386, %v1412
      %v1437 = vadd.f32 %v1387, %v1417
      %v1438 = vadd.f32 %v1388, %v1417
      %v1439 = vadd.f32 %v1389, %v1417
      %v1440 = vadd.f32 %v1390, %v1417
      %v1441 = vadd.f32 %v1391, %v1422
      %v1442 = vadd.f32 %v1392, %v1422
      %v1443 = vadd.f32 %v1393, %v1422
      %v1444 = vadd.f32 %v1394, %v1422
      %v1445 = vadd.f32 %v1395, %v1427
      %v1446 = vadd.f32 %v1396, %v1427
      %v1447 = vadd.f32 %v1397, %v1427
      %v1448 = vadd.f32 %v1398, %v1427
      %v1449 = vxor.u32 %v1429, 2147483648
      %v1450 = vxor.u32 %v1430, 2147483648
      %v1451 = vxor.u32 %v1431, 2147483648
      %v1452 = vxor.u32 %v1432, 2147483648
      %v1453 = vxor.u32 %v1433, 2147483648
      %v1454 = vxor.u32 %v1434, 2147483648
      %v1455 = vxor.u32 %v1435, 2147483648
      %v1456 = vxor.u32 %v1436, 2147483648
      %v1457 = vxor.u32 %v1437, 2147483648
      %v1458 = vxor.u32 %v1438, 2147483648
      %v1459 = vxor.u32 %v1439, 2147483648
      %v1460 = vxor.u32 %v1440, 2147483648
      %v1461 = vxor.u32 %v1441, 2147483648
      %v1462 = vxor.u32 %v1442, 2147483648
      %v1463 = vxor.u32 %v1443, 2147483648
      %v1464 = vxor.u32 %v1444, 2147483648
      %v1465 = vxor.u32 %v1445, 2147483648
      %v1466 = vxor.u32 %v1446, 2147483648
      %v1467 = vxor.u32 %v1447, 2147483648
      %v1468 = vxor.u32 %v1448, 2147483648
      %v1469 = vmul.f32 %v1449, 1.442695
      %v1470 = vpow.pop %v1469
      %v1471 = vmul.f32 %v1450, 1.442695
      %v1472 = vpow.pop %v1471
      %v1473 = vmul.f32 %v1451, 1.442695
      %v1474 = vpow.pop %v1473
      %v1475 = vmul.f32 %v1452, 1.442695
      %v1476 = vpow.pop %v1475
      %v1477 = vmul.f32 %v1453, 1.442695
      %v1478 = vpow.pop %v1477
      %v1479 = vmul.f32 %v1454, 1.442695
      %v1480 = vpow.pop %v1479
      %v1481 = vmul.f32 %v1455, 1.442695
      %v1482 = vpow.pop %v1481
      %v1483 = vmul.f32 %v1456, 1.442695
      %v1484 = vpow.pop %v1483
      %v1485 = vmul.f32 %v1457, 1.442695
      %v1486 = vpow.pop %v1485
      %v1487 = vmul.f32 %v1458, 1.442695
      %v1488 = vpow.pop %v1487
      %v1489 = vmul.f32 %v1459, 1.442695
      %v1490 = vpow.pop %v1489
      %v1491 = vmul.f32 %v1460, 1.442695
      %v1492 = vpow.pop %v1491
      %v1493 = vmul.f32 %v1461, 1.442695
      %v1494 = vpow.pop %v1493
      %v1495 = vmul.f32 %v1462, 1.442695
      %v1496 = vpow.pop %v1495
      %v1497 = vmul.f32 %v1463, 1.442695
      %v1498 = vpow.pop %v1497
      %v1499 = vmul.f32 %v1464, 1.442695
      %v1500 = vpow.pop %v1499
      %v1501 = vmul.f32 %v1465, 1.442695
      %v1502 = vpow.pop %v1501
      %v1503 = vmul.f32 %v1466, 1.442695
      %v1504 = vpow.pop %v1503
      %v1505 = vmul.f32 %v1467, 1.442695
      %v1506 = vpow.pop %v1505
      %v1507 = vmul.f32 %v1468, 1.442695
      %v1508 = vpow.pop %v1507
      %v1509 = vadd.f32 %v1470, 1.0
      %v1510 = vadd.f32 %v1472, 1.0
      %v1511 = vadd.f32 %v1474, 1.0
      %v1512 = vadd.f32 %v1476, 1.0
      %v1513 = vadd.f32 %v1478, 1.0
      %v1514 = vadd.f32 %v1480, 1.0
      %v1515 = vadd.f32 %v1482, 1.0
      %v1516 = vadd.f32 %v1484, 1.0
      %v1517 = vadd.f32 %v1486, 1.0
      %v1518 = vadd.f32 %v1488, 1.0
      %v1519 = vadd.f32 %v1490, 1.0
      %v1520 = vadd.f32 %v1492, 1.0
      %v1521 = vadd.f32 %v1494, 1.0
      %v1522 = vadd.f32 %v1496, 1.0
      %v1523 = vadd.f32 %v1498, 1.0
      %v1524 = vadd.f32 %v1500, 1.0
      %v1525 = vadd.f32 %v1502, 1.0
      %v1526 = vadd.f32 %v1504, 1.0
      %v1527 = vadd.f32 %v1506, 1.0
      %v1528 = vadd.f32 %v1508, 1.0
      %v1529 = vrcp.pop %v1509
      %v1530 = vmul.f32 1.0, %v1529
      %v1531 = vrcp.pop %v1510
      %v1532 = vmul.f32 1.0, %v1531
      %v1533 = vrcp.pop %v1511
      %v1534 = vmul.f32 1.0, %v1533
      %v1535 = vrcp.pop %v1512
      %v1536 = vmul.f32 1.0, %v1535
      %v1537 = vrcp.pop %v1513
      %v1538 = vmul.f32 1.0, %v1537
      %v1539 = vrcp.pop %v1514
      %v1540 = vmul.f32 1.0, %v1539
      %v1541 = vrcp.pop %v1515
      %v1542 = vmul.f32 1.0, %v1541
      %v1543 = vrcp.pop %v1516
      %v1544 = vmul.f32 1.0, %v1543
      %v1545 = vrcp.pop %v1517
      %v1546 = vmul.f32 1.0, %v1545
      %v1547 = vrcp.pop %v1518
      %v1548 = vmul.f32 1.0, %v1547
      %v1549 = vrcp.pop %v1519
      %v1550 = vmul.f32 1.0, %v1549
      %v1551 = vrcp.pop %v1520
      %v1552 = vmul.f32 1.0, %v1551
      %v1553 = vrcp.pop %v1521
      %v1554 = vmul.f32 1.0, %v1553
      %v1555 = vrcp.pop %v1522
      %v1556 = vmul.f32 1.0, %v1555
      %v1557 = vrcp.pop %v1523
      %v1558 = vmul.f32 1.0, %v1557
      %v1559 = vrcp.pop %v1524
      %v1560 = vmul.f32 1.0, %v1559
      %v1561 = vrcp.pop %v1525
      %v1562 = vmul.f32 1.0, %v1561
      %v1563 = vrcp.pop %v1526
      %v1564 = vmul.f32 1.0, %v1563
      %v1565 = vrcp.pop %v1527
      %v1566 = vmul.f32 1.0, %v1565
      %v1567 = vrcp.pop %v1528
      %v1568 = vmul.f32 1.0, %v1567
      %1569 = vst [vmem:[%s170] sm:$0xff] %v1530
      %1570 = vst [vmem:[%s170 + $0x8] sm:$0xff] %v1532
      %1571 = vst [vmem:[%s170 + $0x10] sm:$0xff] %v1534
      %vm1572 = vcmask 982016
      %1573 = vst.msk [vmem:[%s170 + $0x18] sm:$0xff] %vm1572, %v1536
      %1574 = vst [vmem:[%s170 + $0x20] sm:$0xff] %v1538
      %1575 = vst [vmem:[%s170 + $0x28] sm:$0xff] %v1540
      %1576 = vst [vmem:[%s170 + $0x30] sm:$0xff] %v1542
      %1577 = vst.msk [vmem:[%s170 + $0x38] sm:$0xff] %vm1572, %v1544
      %1578 = vst [vmem:[%s170 + $0x40] sm:$0xff] %v1546
      %1579 = vst [vmem:[%s170 + $0x48] sm:$0xff] %v1548
      %1580 = vst [vmem:[%s170 + $0x50] sm:$0xff] %v1550
      %1581 = vst.msk [vmem:[%s170 + $0x58] sm:$0xff] %vm1572, %v1552
      %1582 = vst [vmem:[%s170 + $0x60] sm:$0xff] %v1554
      %1583 = vst [vmem:[%s170 + $0x68] sm:$0xff] %v1556
      %1584 = vst [vmem:[%s170 + $0x70] sm:$0xff] %v1558
      %1585 = vst.msk [vmem:[%s170 + $0x78] sm:$0xff] %vm1572, %v1560
      %1586 = vst [vmem:[%s170 + $0x80] sm:$0xf] %v1562
      %1587 = vst [vmem:[%s170 + $0x88] sm:$0xf] %v1564
      %1588 = vst [vmem:[%s170 + $0x90] sm:$0xf] %v1566
      %vm1589 = vcmask 977920
      %1590 = vst.msk [vmem:[%s170 + $0x98] sm:$0xf] %vm1589, %v1568
      %p1591 = scmp.lt.s32.totalorder %s14, 1
      %s1592 = scalar_select %p1591, %s14, 1
      %s1593 = smul.addr %s1592, 20
      %s1594 = smul.addr %s1593, 8
      %s1595 = scalar_lea.vmem %s3, %s1594
      // Predicated region
      $region33: #{tpu_custom_call.1} parent=31 // pred_check
        %p1596 = pneg %p100
      $region34: #{tpu_custom_call.1} parent=31 // pred_check_branch
        %1598 = sbr.rel (%p1596) target = $region36
      $region35: #{tpu_custom_call.1} parent=31 // pred_region
        _
      $region36: #{tpu_custom_call.1} parent=31 // pred_fallthru
        _
    $region32: #{tpu_custom_call.1} parent=5 // pred_fallthru
      _
    %p1599 = scmp.le.s32.totalorder 2, %s9
    // Predicated region
    $region37: #{tpu_custom_call.1} parent=5 // pred_check
      %p1600 = pneg %p1599
    $region38: #{tpu_custom_call.1} parent=5 // pred_check_branch
      %1602 = sbr.rel (%p1600) target = $region40
    $region39: #{tpu_custom_call.1} parent=5 // pred_region
      %s1603 = ssub.s32 %s9, 2
      // Predicated region
      $region41: #{tpu_custom_call.1} parent=39 // pred_check
        %p1604 = pneg %p106
      $region42: #{tpu_custom_call.1} parent=39 // pred_check_branch
        %1606 = sbr.rel (%p1604) target = $region44
      $region43: #{tpu_custom_call.1} parent=39 // pred_region
        %p1607 = scmp.lt.s32.totalorder %s15, 1
        %s1608 = scalar_select %p1607, %s15, 1
        %s1609 = smul.addr %s1608, 20
        %s1610 = smul.addr %s1609, 8
        %s1611 = scalar_lea.vmem %s3, %s1610
      $region44: #{tpu_custom_call.1} parent=39 // pred_fallthru
        _
    $region40: #{tpu_custom_call.1} parent=5 // pred_fallthru
      _
  $region6: #{tpu_custom_call.1} parent=0 // loop_footer
    %s13 = sadd.s32 1, %s9
  $region7: #{tpu_custom_call.1} parent=0 // loop_footer_branch
    %8 = sbr.rel target = $region3
  $region8: #{tpu_custom_call.1} parent=0 // loop_exit
    _

</llo_original>
